<compile_context>
chip_gen: v6e
topology: v6e:2x2x1
jax: 0.10.0
libtpu: 0.0.40
codegen_flags: <defaults>
</compile_context>

<pallas_src>
import jax
import jax.numpy as jnp
from jax.experimental import pallas as pl
from jax.experimental.pallas import tpu as pltpu

EPS = 1e-5          # nn.BatchNorm3d default
TILE_ROWS = 256     # rows per grid block (multiple of 8); sweep upward on v6e


def _round_up(x, m):
    return (x + m - 1) // m * m


# --------------------------- Pallas kernels ---------------------------------

def _conv_stats_kernel(p_ref, w_ref, a_ref, s_ref):
    """One row-tile of the im2col conv: (TR, Kp)bf16 @ (Kp, Cp)bf16 -> f32 on
    the MXU, plus per-tile per-channel sum / sum-of-squares for BatchNorm."""
    a = jnp.dot(p_ref[...], w_ref[...], preferred_element_type=jnp.float32)
    a_ref[...] = a
    c = a.shape[-1]
    s_ref[0, 0] = jnp.broadcast_to(jnp.sum(a, axis=0, keepdims=True), (8, c))
    s_ref[0, 1] = jnp.broadcast_to(jnp.sum(a * a, axis=0, keepdims=True), (8, c))


def _bn_relu_kernel(a_ref, scale_ref, shift_ref, o_ref):
    """y = relu(a * scale + shift); scale/shift are per-channel (folded BN)."""
    o_ref[...] = jnp.maximum(
        a_ref[...] * scale_ref[...] + shift_ref[...], 0.0).astype(o_ref.dtype)


def _bn_add_relu_kernel(a_ref, r_ref, scale_ref, shift_ref, o_ref):
    """y = relu(a * scale + shift + residual)."""
    o_ref[...] = jnp.maximum(
        a_ref[...] * scale_ref[...] + shift_ref[...] + r_ref[...], 0.0
    ).astype(o_ref.dtype)


# --------------------------- pallas_call wrappers ----------------------------

def _conv_with_stats(patches, w_slab, rows_p, cpad, n_tiles):
    kpad = patches.shape[1]
    return pl.pallas_call(
        _conv_stats_kernel,
        grid=(n_tiles,),
        in_specs=[
            pl.BlockSpec((TILE_ROWS, kpad), lambda i: (i, 0)),
            pl.BlockSpec((kpad, cpad), lambda i: (0, 0)),
        ],
        out_specs=[
            pl.BlockSpec((TILE_ROWS, cpad), lambda i: (i, 0)),
            pl.BlockSpec((1, 2, 8, cpad), lambda i: (i, 0, 0, 0)),
        ],
        out_shape=[
            jax.ShapeDtypeStruct((rows_p, cpad), jnp.float32),
            jax.ShapeDtypeStruct((n_tiles, 2, 8, cpad), jnp.float32),
        ],
        compiler_params=pltpu.CompilerParams(dimension_semantics=("parallel",)),
    )(patches, w_slab)


def _bn_relu(a, scale, shift, n_tiles, out_dtype):
    rows_p, cpad = a.shape
    return pl.pallas_call(
        _bn_relu_kernel,
        grid=(n_tiles,),
        in_specs=[
            pl.BlockSpec((TILE_ROWS, cpad), lambda i: (i, 0)),
            pl.BlockSpec((1, cpad), lambda i: (0, 0)),
            pl.BlockSpec((1, cpad), lambda i: (0, 0)),
        ],
        out_specs=pl.BlockSpec((TILE_ROWS, cpad), lambda i: (i, 0)),
        out_shape=jax.ShapeDtypeStruct((rows_p, cpad), out_dtype),
        compiler_params=pltpu.CompilerParams(dimension_semantics=("parallel",)),
    )(a, scale, shift)


def _bn_add_relu(a, res, scale, shift, n_tiles):
    rows_p, cpad = a.shape
    return pl.pallas_call(
        _bn_add_relu_kernel,
        grid=(n_tiles,),
        in_specs=[
            pl.BlockSpec((TILE_ROWS, cpad), lambda i: (i, 0)),
            pl.BlockSpec((TILE_ROWS, cpad), lambda i: (i, 0)),
            pl.BlockSpec((1, cpad), lambda i: (0, 0)),
            pl.BlockSpec((1, cpad), lambda i: (0, 0)),
        ],
        out_specs=pl.BlockSpec((TILE_ROWS, cpad), lambda i: (i, 0)),
        out_shape=jax.ShapeDtypeStruct((rows_p, cpad), jnp.float32),
        compiler_params=pltpu.CompilerParams(dimension_semantics=("parallel",)),
    )(a, res, scale, shift)


# --------------------------- glue (layout only) -------------------------------

def _im2col(x_ndhwc):
    """(N,D,H,W,C) -> (N*D*H*W, 27*C), tap-major / channel-minor, zero-padded."""
    n, d, h, w, c = x_ndhwc.shape
    xp = jnp.pad(x_ndhwc, ((0, 0), (1, 1), (1, 1), (1, 1), (0, 0)))
    cols = [xp[:, kd:kd + d, kh:kh + h, kw:kw + w, :]
            for kd in range(3) for kh in range(3) for kw in range(3)]
    return jnp.concatenate(cols, axis=-1).reshape(n * d * h * w, 27 * c)


def _prep_w(wt, kpad, cpad):
    """(Cout, Cin, 3,3,3) -> (Kpad, Cpad) bf16 slab matching _im2col ordering."""
    cout, cin = wt.shape[0], wt.shape[1]
    slab = jnp.transpose(wt, (2, 3, 4, 1, 0)).reshape(27 * cin, cout)
    slab = jnp.pad(slab, ((0, kpad - 27 * cin), (0, cpad - cout)))
    return slab.astype(jnp.bfloat16)


def residual_block(x_ncdhw, w1, g1, b1, w2, g2, b2):
    """x_ncdhw: (N, C, D, H, W) f32; w*: (Cout, Cin, 3, 3, 3); g*/b*: (Cout,)."""
    n, c, d, h, w = x_ncdhw.shape
    cout = w1.shape[0]
    assert cout == c, "downsample is None -> in_channels must equal out_channels"

    rows = n * d * h * w
    rows_p = _round_up(rows, TILE_ROWS)
    n_tiles = rows_p // TILE_ROWS
    cpad = _round_up(cout, 128)
    kpad1 = _round_up(27 * c, 128)
    kpad2 = _round_up(27 * cout, 128)

    x_ndhwc = jnp.transpose(x_ncdhw, (0, 2, 3, 4, 1))

    def pad_rows_k(p2d, kp):
        return jnp.pad(p2d, ((0, rows_p - rows), (0, kp - p2d.shape[1])))

    patches1 = pad_rows_k(_im2col(x_ndhwc), kpad1).astype(jnp.bfloat16)
    w1s = _prep_w(w1, kpad1, cpad)
    w2s = _prep_w(w2, kpad2, cpad)
    residual = jnp.pad(x_ndhwc.reshape(rows, c).astype(jnp.float32),
                       ((0, rows_p - rows), (0, cpad - c)))

    def bn_affine(stats, gamma, beta):
        # finalize training-mode batch stats from per-tile partial sums
        s = jnp.sum(stats[:, 0, 0, :], axis=0)
        ss = jnp.sum(stats[:, 1, 0, :], axis=0)
        mean = s / rows
        var = jnp.maximum(ss / rows - mean * mean, 0.0)   # biased variance
        inv = jax.lax.rsqrt(var + EPS)
        gp = jnp.pad(gamma, (0, cpad - cout))
        bp = jnp.pad(beta, (0, cpad - cout))
        scale = (gp * inv).reshape(1, cpad)
        shift = (bp - mean * gp * inv).reshape(1, cpad)
        return scale.astype(jnp.float32), shift.astype(jnp.float32)

    # conv1 (+ BN1 stats) -> BN1 + ReLU
    a1, st1 = _conv_with_stats(patches1, w1s, rows_p, cpad, n_tiles)
    sc1, sh1 = bn_affine(st1, g1, b1)
    y1 = _bn_relu(a1, sc1, sh1, n_tiles, jnp.bfloat16)

    # re-im2col the (real-channel) intermediate for conv2
    y1_sp = y1[:rows, :cout].reshape(n, d, h, w, cout)
    patches2 = pad_rows_k(_im2col(y1_sp), kpad2)   # already bf16

    # conv2 (+ BN2 stats) -> BN2 + residual + ReLU
    a2, st2 = _conv_with_stats(patches2, w2s, rows_p, cpad, n_tiles)
    sc2, sh2 = bn_affine(st2, g2, b2)
    out2d = _bn_add_relu(a2, residual, sc2, sh2, n_tiles)

    out = out2d[:rows, :cout].reshape(n, d, h, w, cout)
    return jnp.transpose(out, (0, 4, 1, 2, 3))   # back to NCDHW


# --------------------------- reference & test --------------------------------

def reference(x, w1, g1, b1, w2, g2, b2):
    """Pure-JAX f32 reference matching the PyTorch forward (training-mode BN)."""
    def conv(hh, wt):
        return jax.lax.conv_general_dilated(
            hh, wt, window_strides=(1, 1, 1),
            padding=((1, 1), (1, 1), (1, 1)),
            dimension_numbers=("NCDHW", "OIDHW", "NCDHW"),
            precision=jax.lax.Precision.HIGHEST)

    def bn(hh, g, b):
        mean = jnp.mean(hh, axis=(0, 2, 3, 4), keepdims=True)
        var = jnp.mean((hh - mean) ** 2, axis=(0, 2, 3, 4), keepdims=True)
        return ((hh - mean) * jax.lax.rsqrt(var + EPS) * g.reshape(1, -1, 1, 1, 1)
                + b.reshape(1, -1, 1, 1, 1))

    out = jnp.maximum(bn(conv(x, w1), g1, b1), 0.0)
    out = bn(conv(out, w2), g2, b2)
    return jnp.maximum(out + x, 0.0)


if __name__ == "__main__":
    key = jax.random.PRNGKey(0)
    N, C, D, H, W = 2, 8, 8, 8, 8
    k = jax.random.split(key, 7)

    x = jax.random.normal(k[0], (N, C, D, H, W), jnp.float32)
    std = (2.0 / (C * 27)) ** 0.5  # kaiming-ish, deterministic
    w1 = std * jax.random.normal(k[1], (C, C, 3, 3, 3), jnp.float32)
    w2 = std * jax.random.normal(k[2], (C, C, 3, 3, 3), jnp.float32)
    g1 = 1.0 + 0.1 * jax.random.normal(k[3], (C,), jnp.float32)
    b1 = 0.1 * jax.random.normal(k[4], (C,), jnp.float32)
    g2 = 1.0 + 0.1 * jax.random.normal(k[5], (C,), jnp.float32)
    b2 = 0.1 * jax.random.normal(k[6], (C,), jnp.float32)

    fn = jax.jit(residual_block)
    out = jax.block_until_ready(fn(x, w1, g1, b1, w2, g2, b2))
    ref = jax.block_until_ready(reference(x, w1, g1, b1, w2, g2, b2))

    assert out.shape == (N, C, D, H, W)
    max_err = float(jnp.max(jnp.abs(out - ref)))
    # bf16 MXU inputs with f32 accumulation vs. an f32 HIGHEST reference
    if max_err > 5e-2:
        raise AssertionError(f"kernel/reference mismatch: max abs err = {max_err}")
    print("KERNEL_OK")
</pallas_src>

<mosaic_0001>
module attributes {stable_mosaic.version = 11 : i64} {
  func.func @_conv_stats_kernel(%arg0: i32, %arg1: memref<256x256xbf16, #tpu.memory_space<vmem>>, %arg2: memref<256x128xbf16, #tpu.memory_space<vmem>>, %arg3: memref<256x128xf32, #tpu.memory_space<vmem>>, %arg4: memref<1x2x8x128xf32, #tpu.memory_space<vmem>>) attributes {dimension_semantics = [#tpu.dimension_semantics<parallel>], iteration_bounds = array<i64: 4>, scalar_prefetch = 0 : i64, scratch_operands = 0 : i64, tpu.core_type = #tpu.core_type<tc>, window_params = [{transform_indices = @transform_0, window_bounds = array<i64: 256, 256>}, {pipeline_mode = #tpu.pipeline_mode<synchronous>, transform_indices = @transform_1, window_bounds = array<i64: 256, 128>}, {transform_indices = @transform_2, window_bounds = array<i64: 256, 128>}, {transform_indices = @transform_3, window_bounds = array<i64: 1, 2, 8, 128>}]} {
    %c0 = arith.constant 0 : index
    %c0_0 = arith.constant 0 : index
    %0 = vector.load %arg1[%c0, %c0_0] : memref<256x256xbf16, #tpu.memory_space<vmem>>, vector<256x256xbf16>
    %c0_1 = arith.constant 0 : index
    %c0_2 = arith.constant 0 : index
    %1 = vector.load %arg2[%c0_1, %c0_2] : memref<256x128xbf16, #tpu.memory_space<vmem>>, vector<256x128xbf16>
    %cst = arith.constant dense<0.000000e+00> : vector<256x128xf32>
    %2 = tpu.matmul %0, %1, %cst {dimension_numbers = #tpu.dot_dimension_numbers<[1], [0], [0], [1], [0, 0, 1, 1], [], []>} : vector<256x256xbf16>, vector<256x128xbf16>, vector<256x128xf32> -> vector<256x128xf32>
    %c0_3 = arith.constant 0 : index
    %c0_4 = arith.constant 0 : index
    %3 = vector.load %arg3[%c0_3, %c0_4] : memref<256x128xf32, #tpu.memory_space<vmem>>, vector<256x128xf32>
    tpu.vector_store %arg3[%c0_3, %c0_4], %2 {strides = array<i32>} : memref<256x128xf32, #tpu.memory_space<vmem>>, vector<256x128xf32>,
    %cst_5 = arith.constant dense<0.000000e+00> : vector<128xf32>
    %4 = vector.multi_reduction <add>, %2, %cst_5 [0] : vector<256x128xf32> to vector<128xf32>
    %5 = vector.shape_cast %4 : vector<128xf32> to vector<1x128xf32>
    %6 = vector.shape_cast %5 : vector<1x128xf32> to vector<1x128xf32>
    %7 = vector.broadcast %6 : vector<1x128xf32> to vector<8x128xf32>
    %c0_6 = arith.constant 0 : index
    %c0_7 = arith.constant 0 : index
    %c0_8 = arith.constant 0 : index
    %c0_9 = arith.constant 0 : index
    %8 = vector.load %arg4[%c0_6, %c0_7, %c0_8, %c0_9] : memref<1x2x8x128xf32, #tpu.memory_space<vmem>>, vector<1x1x8x128xf32>
    %9 = vector.shape_cast %8 : vector<1x1x8x128xf32> to vector<8x128xf32>
    %10 = vector.shape_cast %7 : vector<8x128xf32> to vector<1x1x8x128xf32>
    tpu.vector_store %arg4[%c0_6, %c0_7, %c0_8, %c0_9], %10 {strides = array<i32>} : memref<1x2x8x128xf32, #tpu.memory_space<vmem>>, vector<1x1x8x128xf32>,
    %11 = arith.mulf %2, %2 : vector<256x128xf32>
    %cst_10 = arith.constant dense<0.000000e+00> : vector<128xf32>
    %12 = vector.multi_reduction <add>, %11, %cst_10 [0] : vector<256x128xf32> to vector<128xf32>
    %13 = vector.shape_cast %12 : vector<128xf32> to vector<1x128xf32>
    %14 = vector.shape_cast %13 : vector<1x128xf32> to vector<1x128xf32>
    %15 = vector.broadcast %14 : vector<1x128xf32> to vector<8x128xf32>
    %c0_11 = arith.constant 0 : index
    %c1 = arith.constant 1 : index
    %c0_12 = arith.constant 0 : index
    %c0_13 = arith.constant 0 : index
    %16 = vector.load %arg4[%c0_11, %c1, %c0_12, %c0_13] : memref<1x2x8x128xf32, #tpu.memory_space<vmem>>, vector<1x1x8x128xf32>
    %17 = vector.shape_cast %16 : vector<1x1x8x128xf32> to vector<8x128xf32>
    %18 = vector.shape_cast %15 : vector<8x128xf32> to vector<1x1x8x128xf32>
    tpu.vector_store %arg4[%c0_11, %c1, %c0_12, %c0_13], %18 {strides = array<i32>} : memref<1x2x8x128xf32, #tpu.memory_space<vmem>>, vector<1x1x8x128xf32>,
    return
  }
  func.func @transform_0(%arg0: i32) -> (i32, i32) {
    %c0_i32 = arith.constant 0 : i32
    %c0_i32_0 = arith.constant 0 : i32
    return %arg0, %c0_i32 : i32, i32
  }
  func.func @transform_1(%arg0: i32) -> (i32, i32) {
    %c0_i32 = arith.constant 0 : i32
    %c0_i32_0 = arith.constant 0 : i32
    %c0_i32_1 = arith.constant 0 : i32
    return %c0_i32, %c0_i32_0 : i32, i32
  }
  func.func @transform_2(%arg0: i32) -> (i32, i32) {
    %c0_i32 = arith.constant 0 : i32
    %c0_i32_0 = arith.constant 0 : i32
    return %arg0, %c0_i32 : i32, i32
  }
  func.func @transform_3(%arg0: i32) -> (i32, i32, i32, i32) {
    %c0_i32 = arith.constant 0 : i32
    %c0_i32_0 = arith.constant 0 : i32
    %c0_i32_1 = arith.constant 0 : i32
    %c0_i32_2 = arith.constant 0 : i32
    return %arg0, %c0_i32, %c0_i32_0, %c0_i32_1 : i32, i32, i32, i32
  }
}

module attributes {stable_mosaic.version = 11 : i64} {
  func.func @_bn_relu_kernel(%arg0: i32, %arg1: memref<256x128xf32, #tpu.memory_space<vmem>>, %arg2: memref<1x128xf32, #tpu.memory_space<vmem>>, %arg3: memref<1x128xf32, #tpu.memory_space<vmem>>, %arg4: memref<256x128xbf16, #tpu.memory_space<vmem>>) attributes {dimension_semantics = [#tpu.dimension_semantics<parallel>], iteration_bounds = array<i64: 4>, scalar_prefetch = 0 : i64, scratch_operands = 0 : i64, tpu.core_type = #tpu.core_type<tc>, window_params = [{transform_indices = @transform_0, window_bounds = array<i64: 256, 128>}, {pipeline_mode = #tpu.pipeline_mode<synchronous>, transform_indices = @transform_1, window_bounds = array<i64: 1, 128>}, {pipeline_mode = #tpu.pipeline_mode<synchronous>, transform_indices = @transform_2, window_bounds = array<i64: 1, 128>}, {transform_indices = @transform_3, window_bounds = array<i64: 256, 128>}]} {
    %c0 = arith.constant 0 : index
    %c0_0 = arith.constant 0 : index
    %0 = vector.load %arg1[%c0, %c0_0] : memref<256x128xf32, #tpu.memory_space<vmem>>, vector<256x128xf32>
    %c0_1 = arith.constant 0 : index
    %c0_2 = arith.constant 0 : index
    %1 = vector.load %arg2[%c0_1, %c0_2] : memref<1x128xf32, #tpu.memory_space<vmem>>, vector<1x128xf32>
    %2 = vector.broadcast %1 : vector<1x128xf32> to vector<256x128xf32>
    %3 = arith.mulf %0, %2 : vector<256x128xf32>
    %c0_3 = arith.constant 0 : index
    %c0_4 = arith.constant 0 : index
    %4 = vector.load %arg3[%c0_3, %c0_4] : memref<1x128xf32, #tpu.memory_space<vmem>>, vector<1x128xf32>
    %5 = vector.broadcast %4 : vector<1x128xf32> to vector<256x128xf32>
    %6 = arith.addf %3, %5 : vector<256x128xf32>
    %cst = arith.constant 0.000000e+00 : f32
    %7 = vector.broadcast %cst : f32 to vector<256x128xf32>
    %8 = arith.maximumf %6, %7 : vector<256x128xf32>
    %9 = arith.truncf %8 : vector<256x128xf32> to vector<256x128xbf16>
    %c0_5 = arith.constant 0 : index
    %c0_6 = arith.constant 0 : index
    %10 = vector.load %arg4[%c0_5, %c0_6] : memref<256x128xbf16, #tpu.memory_space<vmem>>, vector<256x128xbf16>
    tpu.vector_store %arg4[%c0_5, %c0_6], %9 {strides = array<i32>} : memref<256x128xbf16, #tpu.memory_space<vmem>>, vector<256x128xbf16>,
    return
  }
  func.func @transform_0(%arg0: i32) -> (i32, i32) {
    %c0_i32 = arith.constant 0 : i32
    %c0_i32_0 = arith.constant 0 : i32
    return %arg0, %c0_i32 : i32, i32
  }
  func.func @transform_1(%arg0: i32) -> (i32, i32) {
    %c0_i32 = arith.constant 0 : i32
    %c0_i32_0 = arith.constant 0 : i32
    %c0_i32_1 = arith.constant 0 : i32
    return %c0_i32, %c0_i32_0 : i32, i32
  }
  func.func @transform_2(%arg0: i32) -> (i32, i32) {
    %c0_i32 = arith.constant 0 : i32
    %c0_i32_0 = arith.constant 0 : i32
    %c0_i32_1 = arith.constant 0 : i32
    return %c0_i32, %c0_i32_0 : i32, i32
  }
  func.func @transform_3(%arg0: i32) -> (i32, i32) {
    %c0_i32 = arith.constant 0 : i32
    %c0_i32_0 = arith.constant 0 : i32
    return %arg0, %c0_i32 : i32, i32
  }
}

module attributes {stable_mosaic.version = 11 : i64} {
  func.func @_bn_add_relu_kernel(%arg0: i32, %arg1: memref<256x128xf32, #tpu.memory_space<vmem>>, %arg2: memref<256x128xf32, #tpu.memory_space<vmem>>, %arg3: memref<1x128xf32, #tpu.memory_space<vmem>>, %arg4: memref<1x128xf32, #tpu.memory_space<vmem>>, %arg5: memref<256x128xf32, #tpu.memory_space<vmem>>) attributes {dimension_semantics = [#tpu.dimension_semantics<parallel>], iteration_bounds = array<i64: 4>, scalar_prefetch = 0 : i64, scratch_operands = 0 : i64, tpu.core_type = #tpu.core_type<tc>, window_params = [{transform_indices = @transform_0, window_bounds = array<i64: 256, 128>}, {transform_indices = @transform_1, window_bounds = array<i64: 256, 128>}, {pipeline_mode = #tpu.pipeline_mode<synchronous>, transform_indices = @transform_2, window_bounds = array<i64: 1, 128>}, {pipeline_mode = #tpu.pipeline_mode<synchronous>, transform_indices = @transform_3, window_bounds = array<i64: 1, 128>}, {transform_indices = @transform_4, window_bounds = array<i64: 256, 128>}]} {
    %c0 = arith.constant 0 : index
    %c0_0 = arith.constant 0 : index
    %0 = vector.load %arg1[%c0, %c0_0] : memref<256x128xf32, #tpu.memory_space<vmem>>, vector<256x128xf32>
    %c0_1 = arith.constant 0 : index
    %c0_2 = arith.constant 0 : index
    %1 = vector.load %arg3[%c0_1, %c0_2] : memref<1x128xf32, #tpu.memory_space<vmem>>, vector<1x128xf32>
    %2 = vector.broadcast %1 : vector<1x128xf32> to vector<256x128xf32>
    %3 = arith.mulf %0, %2 : vector<256x128xf32>
    %c0_3 = arith.constant 0 : index
    %c0_4 = arith.constant 0 : index
    %4 = vector.load %arg4[%c0_3, %c0_4] : memref<1x128xf32, #tpu.memory_space<vmem>>, vector<1x128xf32>
    %5 = vector.broadcast %4 : vector<1x128xf32> to vector<256x128xf32>
    %6 = arith.addf %3, %5 : vector<256x128xf32>
    %c0_5 = arith.constant 0 : index
    %c0_6 = arith.constant 0 : index
    %7 = vector.load %arg2[%c0_5, %c0_6] : memref<256x128xf32, #tpu.memory_space<vmem>>, vector<256x128xf32>
    %8 = arith.addf %6, %7 : vector<256x128xf32>
    %cst = arith.constant 0.000000e+00 : f32
    %9 = vector.broadcast %cst : f32 to vector<256x128xf32>
    %10 = arith.maximumf %8, %9 : vector<256x128xf32>
    %c0_7 = arith.constant 0 : index
    %c0_8 = arith.constant 0 : index
    %11 = vector.load %arg5[%c0_7, %c0_8] : memref<256x128xf32, #tpu.memory_space<vmem>>, vector<256x128xf32>
    tpu.vector_store %arg5[%c0_7, %c0_8], %10 {strides = array<i32>} : memref<256x128xf32, #tpu.memory_space<vmem>>, vector<256x128xf32>,
    return
  }
  func.func @transform_0(%arg0: i32) -> (i32, i32) {
    %c0_i32 = arith.constant 0 : i32
    %c0_i32_0 = arith.constant 0 : i32
    return %arg0, %c0_i32 : i32, i32
  }
  func.func @transform_1(%arg0: i32) -> (i32, i32) {
    %c0_i32 = arith.constant 0 : i32
    %c0_i32_0 = arith.constant 0 : i32
    return %arg0, %c0_i32 : i32, i32
  }
  func.func @transform_2(%arg0: i32) -> (i32, i32) {
    %c0_i32 = arith.constant 0 : i32
    %c0_i32_0 = arith.constant 0 : i32
    %c0_i32_1 = arith.constant 0 : i32
    return %c0_i32, %c0_i32_0 : i32, i32
  }
  func.func @transform_3(%arg0: i32) -> (i32, i32) {
    %c0_i32 = arith.constant 0 : i32
    %c0_i32_0 = arith.constant 0 : i32
    %c0_i32_1 = arith.constant 0 : i32
    return %c0_i32, %c0_i32_0 : i32, i32
  }
  func.func @transform_4(%arg0: i32) -> (i32, i32) {
    %c0_i32 = arith.constant 0 : i32
    %c0_i32_0 = arith.constant 0 : i32
    return %arg0, %c0_i32 : i32, i32
  }
}

</mosaic_0001>

<llo_original>
// kernel: residual_block.5
$region0: #{residual_block.5}
  #allocation0 [shape = 'u32[]', space=smem, size = 0x4, offset = 0x4, fixed_abs, tag = 'smem constant byte address 0x4 - core index']
  #allocation1 [shape = 'u32[144,128]{1,0:T(1,128)}', space=vmem, size = 0x12000, scoped, tag = 'internal scratch']
  %s0 = inlined_call_operand.vmem [shape: f32[1024,128], index: 0, kind: input, shape index: {}]
  %s1 = inlined_call_operand.vmem [shape: f32[1,128], index: 1, kind: input, shape index: {}]
  %s2 = inlined_call_operand.vmem [shape: f32[1,128], index: 2, kind: input, shape index: {}]
  %s3 = inlined_call_operand.vmem [shape: bf16[1024,128], index: 3, kind: output, shape index: {}]
  %s4 = sld [smem:[#allocation0]]
  $region45: #{residual_block.5} parent=0
    _
  %s6 = ssub.s32 1, %s4
  %s7 = scalar_select 0, %s6, %s4
  loop: start=0, step=1, limit=6
  $region2: #{residual_block.5} parent=0 // loop_pre_header
    _
  $region3: #{residual_block.5} parent=0 // loop_header
    %s9 = sphi 0, %s13
    %p10 = scmp.ge.s32.totalorder %s9, 6
    %s19 = sphi 0, %s21
    %s22 = sphi 0, %s19
    %s23 = sphi 0, %s22
    %s39 = sphi 0, %s23
    %s43 = sphi 0, %s43
    %s45 = sphi 0, %s43
    %s46 = sphi 0, %s45
    %s60 = sphi 0, %s46
    %s64 = sphi 0, %s64
    %s66 = sphi 0, %s64
    %s67 = sphi 0, %s66
    %s81 = sphi 0, %s67
    %s87 = sphi 0, %s89
    %s90 = sphi 0, %s87
    %s91 = sphi 0, %s90
    %s107 = sphi 0, %s91
  $region4: #{residual_block.5} parent=0 // loop_header_branch
    %12 = sbr.rel (%p10) target = $region8
  $region5: #{residual_block.5} parent=0 // loop_body
    %s14 = ssub.s32 %s9, 1
    %s15 = ssub.s32 %s9, 2
    %s16 = sadd.s32 %s9, 1
    %s17 = ssub.s32 %s9, %s16
    %p18 = scmp.eq.s32.totalorder %s17, 0
    %s20 = sadd.s32 %s19, 1
    %s21 = scalar_select %p18, %s19, %s20
    %p24 = pneg %p18
    %p25 = scmp.eq.s32.totalorder %s9, 3
    %p26 = por %p24, %p25
    %p27 = scmp.ne.s32.totalorder %s19, %s22
    %p28 = scmp.eq.s32.totalorder %s9, 0
    %p29 = por %p27, %p28
    %p30 = scmp.ne.s32.totalorder %s19, %s22
    %p31 = scmp.eq.s32.totalorder %s14, 3
    %p32 = por %p30, %p31
    %p33 = scmp.ne.s32.totalorder %s22, %s23
    %p34 = scmp.eq.s32.totalorder %s14, 0
    %p35 = por %p33, %p34
    %p36 = scmp.ne.s32.totalorder %s22, %s23
    %p37 = scmp.eq.s32.totalorder %s15, 3
    %p38 = por %p36, %p37
    %p40 = scmp.ne.s32.totalorder %s23, %s39
    %p41 = scmp.eq.s32.totalorder %s15, 0
    %p42 = por %p40, %p41
    %s44 = sadd.s32 %s43, 1
    %p47 = scmp.eq.s32.totalorder %s9, 3
    %p48 = scmp.ne.s32.totalorder %s43, %s45
    %p49 = scmp.eq.s32.totalorder %s9, 0
    %p50 = por %p48, %p49
    %p51 = scmp.ne.s32.totalorder %s43, %s45
    %p52 = scmp.eq.s32.totalorder %s14, 3
    %p53 = por %p51, %p52
    %p54 = scmp.ne.s32.totalorder %s45, %s46
    %p55 = scmp.eq.s32.totalorder %s14, 0
    %p56 = por %p54, %p55
    %p57 = scmp.ne.s32.totalorder %s45, %s46
    %p58 = scmp.eq.s32.totalorder %s15, 3
    %p59 = por %p57, %p58
    %p61 = scmp.ne.s32.totalorder %s46, %s60
    %p62 = scmp.eq.s32.totalorder %s15, 0
    %p63 = por %p61, %p62
    %s65 = sadd.s32 %s64, 1
    %p68 = scmp.eq.s32.totalorder %s9, 3
    %p69 = scmp.ne.s32.totalorder %s64, %s66
    %p70 = scmp.eq.s32.totalorder %s9, 0
    %p71 = por %p69, %p70
    %p72 = scmp.ne.s32.totalorder %s64, %s66
    %p73 = scmp.eq.s32.totalorder %s14, 3
    %p74 = por %p72, %p73
    %p75 = scmp.ne.s32.totalorder %s66, %s67
    %p76 = scmp.eq.s32.totalorder %s14, 0
    %p77 = por %p75, %p76
    %p78 = scmp.ne.s32.totalorder %s66, %s67
    %p79 = scmp.eq.s32.totalorder %s15, 3
    %p80 = por %p78, %p79
    %p82 = scmp.ne.s32.totalorder %s67, %s81
    %p83 = scmp.eq.s32.totalorder %s15, 0
    %p84 = por %p82, %p83
    %s85 = ssub.s32 %s9, %s16
    %p86 = scmp.eq.s32.totalorder %s85, 0
    %s88 = sadd.s32 %s87, 1
    %s89 = scalar_select %p86, %s87, %s88
    %p92 = pneg %p86
    %p93 = scmp.eq.s32.totalorder %s9, 3
    %p94 = por %p92, %p93
    %p95 = scmp.ne.s32.totalorder %s87, %s90
    %p96 = scmp.eq.s32.totalorder %s9, 0
    %p97 = por %p95, %p96
    %p98 = scmp.ne.s32.totalorder %s87, %s90
    %p99 = scmp.eq.s32.totalorder %s14, 3
    %p100 = por %p98, %p99
    %p101 = scmp.ne.s32.totalorder %s90, %s91
    %p102 = scmp.eq.s32.totalorder %s14, 0
    %p103 = por %p101, %p102
    %p104 = scmp.ne.s32.totalorder %s90, %s91
    %p105 = scmp.eq.s32.totalorder %s15, 3
    %p106 = por %p104, %p105
    %p108 = scmp.ne.s32.totalorder %s91, %s107
    %p109 = scmp.eq.s32.totalorder %s15, 0
    %p110 = por %p108, %p109
    %p111 = scmp.le.s32.totalorder 1, %s9
    %p112 = scmp.lt.s32.totalorder %s9, 5
    %p113 = pnand %p111, %p112
    %p114 = pneg %p113
    // Predicated region
    $region9: #{residual_block.5} parent=5 // pred_check
      _
    $region10: #{residual_block.5} parent=5 // pred_check_branch
      %116 = sbr.rel (%p113) target = $region12
    $region11: #{residual_block.5} parent=5 // pred_region
      %s117 = ssub.s32 %s9, 1
      // Predicated region
      $region13: #{residual_block.5} parent=11 // pred_check
        %p118 = pneg %p56
      $region14: #{residual_block.5} parent=11 // pred_check_branch
        %120 = sbr.rel (%p118) target = $region16
      $region15: #{residual_block.5} parent=11 // pred_region
        _
      $region16: #{residual_block.5} parent=11 // pred_fallthru
        _
      // Predicated region
      $region17: #{residual_block.5} parent=11 // pred_check
        %p121 = pneg %p77
      $region18: #{residual_block.5} parent=11 // pred_check_branch
        %123 = sbr.rel (%p121) target = $region20
      $region19: #{residual_block.5} parent=11 // pred_region
        _
      $region20: #{residual_block.5} parent=11 // pred_fallthru
        _
    $region12: #{residual_block.5} parent=5 // pred_fallthru
      _
    %p124 = scmp.lt.s32.totalorder %s9, 4
    // Predicated region
    $region21: #{residual_block.5} parent=5 // pred_check
      %p125 = pneg %p124
    $region22: #{residual_block.5} parent=5 // pred_check_branch
      %127 = sbr.rel (%p125) target = $region24
    $region23: #{residual_block.5} parent=5 // pred_region
      // Predicated region
      $region25: #{residual_block.5} parent=23 // pred_check
        %p128 = pneg %p29
      $region26: #{residual_block.5} parent=23 // pred_check_branch
        %130 = sbr.rel (%p128) target = $region28
      $region27: #{residual_block.5} parent=23 // pred_region
        %s131 = smul.u32 32, %s9
        %p132 = scmp.lt.s32.totalorder %s131, 127
        %s133 = scalar_select %p132, %s131, 127
        %s134 = smul.addr %s133, 8
        %s135 = scalar_lea.vmem %s0, %s134
        %s136 = smul.u32 32, %s9
      $region28: #{residual_block.5} parent=23 // pred_fallthru
        _
    $region24: #{residual_block.5} parent=5 // pred_fallthru
      _
    %p137 = scmp.le.s32.totalorder 1, %s9
    %p138 = scmp.lt.s32.totalorder %s9, 5
    %p139 = pnand %p137, %p138
    %p140 = pneg %p139
    // Predicated region
    $region29: #{residual_block.5} parent=5 // pred_check
      _
    $region30: #{residual_block.5} parent=5 // pred_check_branch
      %142 = sbr.rel (%p139) target = $region32
    $region31: #{residual_block.5} parent=5 // pred_region
      %s143 = ssub.s32 %s9, 1
      %s144 = smul.u32 32, %s14
      %p145 = scmp.lt.s32.totalorder %s144, 127
      %s146 = scalar_select %p145, %s144, 127
      %s147 = smul.addr %s146, 8
      %s148 = scalar_lea.vmem %s0, %s147
      %p149 = pneg %p35
      %p150 = pneg %p32
      %p151 = pneg %p56
      %p152 = pneg %p53
      %p153 = pneg %p77
      %p154 = pneg %p74
      %p155 = pneg %p103
      %p156 = pneg %p100
      %s157 = smul.u32 32, %s14
      %p158 = scmp.lt.s32.totalorder %s157, 127
      %s159 = scalar_select %p158, %s157, 127
      %s160 = smul.addr %s159, 4
      %s161 = scalar_lea.vmem %s3, %s160
      %s162 = smul.u32 32, %s14
      %p163 = scmp.lt.s32.totalorder %s162, 127
      %s164 = scalar_select %p163, %s162, 127
      %s165 = smul.addr %s164, 8
      %s166 = scalar_lea.vmem %s0, %s165
      %s167 = smul.u32 32, %s14
      %s168 = smul.u32 32, %s14
      %p169 = scmp.lt.s32.totalorder %s168, 127
      %s170 = scalar_select %p169, %s168, 127
      %s171 = smul.addr %s170, 4
      %s172 = scalar_lea.vmem %s3, %s171
      %s173 = smul.u32 32, %s14
      %v174 = vld [vmem:[%s166] sm:$0xff]
      %v175 = vld [vmem:[%s166 + $0x8] sm:$0xff]
      %v176 = vld [vmem:[%s166 + $0x10] sm:$0xff]
      %v177 = vld [vmem:[%s166 + $0x18] sm:$0xff]
      %v178 = vld [vmem:[%s166 + $0x20] sm:$0xff]
      %v179 = vld [vmem:[%s166 + $0x28] sm:$0xff]
      %v180 = vld [vmem:[%s166 + $0x30] sm:$0xff]
      %v181 = vld [vmem:[%s166 + $0x38] sm:$0xff]
      %v182 = vld [vmem:[%s166 + $0x40] sm:$0xff]
      %v183 = vld [vmem:[%s166 + $0x48] sm:$0xff]
      %v184 = vld [vmem:[%s166 + $0x50] sm:$0xff]
      %v185 = vld [vmem:[%s166 + $0x58] sm:$0xff]
      %v186 = vld [vmem:[%s166 + $0x60] sm:$0xff]
      %v187 = vld [vmem:[%s166 + $0x68] sm:$0xff]
      %v188 = vld [vmem:[%s166 + $0x70] sm:$0xff]
      %v189 = vld [vmem:[%s166 + $0x78] sm:$0xff]
      %v190 = vld [vmem:[%s166 + $0x80] sm:$0xff]
      %v191 = vld [vmem:[%s166 + $0x88] sm:$0xff]
      %v192 = vld [vmem:[%s166 + $0x90] sm:$0xff]
      %v193 = vld [vmem:[%s166 + $0x98] sm:$0xff]
      %v194 = vld [vmem:[%s166 + $0xa0] sm:$0xff]
      %v195 = vld [vmem:[%s166 + $0xa8] sm:$0xff]
      %v196 = vld [vmem:[%s166 + $0xb0] sm:$0xff]
      %v197 = vld [vmem:[%s166 + $0xb8] sm:$0xff]
      %v198 = vld [vmem:[%s166 + $0xc0] sm:$0xff]
      %v199 = vld [vmem:[%s166 + $0xc8] sm:$0xff]
      %v200 = vld [vmem:[%s166 + $0xd0] sm:$0xff]
      %v201 = vld [vmem:[%s166 + $0xd8] sm:$0xff]
      %v202 = vld [vmem:[%s166 + $0xe0] sm:$0xff]
      %v203 = vld [vmem:[%s166 + $0xe8] sm:$0xff]
      %v204 = vld [vmem:[%s166 + $0xf0] sm:$0xff]
      %v205 = vld [vmem:[%s166 + $0xf8] sm:$0xff]
      %v206 = vld [vmem:[%s1] sm:$0x1]
      %v208 = vlaneseq
      %v209 = vshrl.u32 %v208, 7
      %v210 = vsub.s32 0, %v209
      %v211 = vrot.slane %v206, %v210
      %v213 = vmul.f32 %v174, %v211
      %v214 = vmul.f32 %v175, %v211
      %v215 = vmul.f32 %v176, %v211
      %v216 = vmul.f32 %v177, %v211
      %v217 = vmul.f32 %v178, %v211
      %v218 = vmul.f32 %v179, %v211
      %v219 = vmul.f32 %v180, %v211
      %v220 = vmul.f32 %v181, %v211
      %v221 = vmul.f32 %v182, %v211
      %v222 = vmul.f32 %v183, %v211
      %v223 = vmul.f32 %v184, %v211
      %v224 = vmul.f32 %v185, %v211
      %v225 = vmul.f32 %v186, %v211
      %v226 = vmul.f32 %v187, %v211
      %v227 = vmul.f32 %v188, %v211
      %v228 = vmul.f32 %v189, %v211
      %v229 = vmul.f32 %v190, %v211
      %v230 = vmul.f32 %v191, %v211
      %v231 = vmul.f32 %v192, %v211
      %v232 = vmul.f32 %v193, %v211
      %v233 = vmul.f32 %v194, %v211
      %v234 = vmul.f32 %v195, %v211
      %v235 = vmul.f32 %v196, %v211
      %v236 = vmul.f32 %v197, %v211
      %v237 = vmul.f32 %v198, %v211
      %v238 = vmul.f32 %v199, %v211
      %v239 = vmul.f32 %v200, %v211
      %v240 = vmul.f32 %v201, %v211
      %v241 = vmul.f32 %v202, %v211
      %v242 = vmul.f32 %v203, %v211
      %v243 = vmul.f32 %v204, %v211
      %v244 = vmul.f32 %v205, %v211
      %v245 = vld [vmem:[%s2] sm:$0x1]
      %v247 = vlaneseq
      %v248 = vshrl.u32 %v247, 7
      %v249 = vsub.s32 0, %v248
      %v250 = vrot.slane %v245, %v249
      %v252 = vadd.f32 %v213, %v250
      %v253 = vadd.f32 %v214, %v250
      %v254 = vadd.f32 %v215, %v250
      %v255 = vadd.f32 %v216, %v250
      %v256 = vadd.f32 %v217, %v250
      %v257 = vadd.f32 %v218, %v250
      %v258 = vadd.f32 %v219, %v250
      %v259 = vadd.f32 %v220, %v250
      %v260 = vadd.f32 %v221, %v250
      %v261 = vadd.f32 %v222, %v250
      %v262 = vadd.f32 %v223, %v250
      %v263 = vadd.f32 %v224, %v250
      %v264 = vadd.f32 %v225, %v250
      %v265 = vadd.f32 %v226, %v250
      %v266 = vadd.f32 %v227, %v250
      %v267 = vadd.f32 %v228, %v250
      %v268 = vadd.f32 %v229, %v250
      %v269 = vadd.f32 %v230, %v250
      %v270 = vadd.f32 %v231, %v250
      %v271 = vadd.f32 %v232, %v250
      %v272 = vadd.f32 %v233, %v250
      %v273 = vadd.f32 %v234, %v250
      %v274 = vadd.f32 %v235, %v250
      %v275 = vadd.f32 %v236, %v250
      %v276 = vadd.f32 %v237, %v250
      %v277 = vadd.f32 %v238, %v250
      %v278 = vadd.f32 %v239, %v250
      %v279 = vadd.f32 %v240, %v250
      %v280 = vadd.f32 %v241, %v250
      %v281 = vadd.f32 %v242, %v250
      %v282 = vadd.f32 %v243, %v250
      %v283 = vadd.f32 %v244, %v250
      %v284 = vmax.f32 %v252, 0.0
      %v285 = vmax.f32 %v253, 0.0
      %v286 = vmax.f32 %v254, 0.0
      %v287 = vmax.f32 %v255, 0.0
      %v288 = vmax.f32 %v256, 0.0
      %v289 = vmax.f32 %v257, 0.0
      %v290 = vmax.f32 %v258, 0.0
      %v291 = vmax.f32 %v259, 0.0
      %v292 = vmax.f32 %v260, 0.0
      %v293 = vmax.f32 %v261, 0.0
      %v294 = vmax.f32 %v262, 0.0
      %v295 = vmax.f32 %v263, 0.0
      %v296 = vmax.f32 %v264, 0.0
      %v297 = vmax.f32 %v265, 0.0
      %v298 = vmax.f32 %v266, 0.0
      %v299 = vmax.f32 %v267, 0.0
      %v300 = vmax.f32 %v268, 0.0
      %v301 = vmax.f32 %v269, 0.0
      %v302 = vmax.f32 %v270, 0.0
      %v303 = vmax.f32 %v271, 0.0
      %v304 = vmax.f32 %v272, 0.0
      %v305 = vmax.f32 %v273, 0.0
      %v306 = vmax.f32 %v274, 0.0
      %v307 = vmax.f32 %v275, 0.0
      %v308 = vmax.f32 %v276, 0.0
      %v309 = vmax.f32 %v277, 0.0
      %v310 = vmax.f32 %v278, 0.0
      %v311 = vmax.f32 %v279, 0.0
      %v312 = vmax.f32 %v280, 0.0
      %v313 = vmax.f32 %v281, 0.0
      %v314 = vmax.f32 %v282, 0.0
      %v315 = vmax.f32 %v283, 0.0
      %v316 = vpack.c.bf16 %v285, %v284
      %v317 = vpack.c.bf16 %v287, %v286
      %v318 = vpack.c.bf16 %v289, %v288
      %v319 = vpack.c.bf16 %v291, %v290
      %v320 = vpack.c.bf16 %v293, %v292
      %v321 = vpack.c.bf16 %v295, %v294
      %v322 = vpack.c.bf16 %v297, %v296
      %v323 = vpack.c.bf16 %v299, %v298
      %v324 = vpack.c.bf16 %v301, %v300
      %v325 = vpack.c.bf16 %v303, %v302
      %v326 = vpack.c.bf16 %v305, %v304
      %v327 = vpack.c.bf16 %v307, %v306
      %v328 = vpack.c.bf16 %v309, %v308
      %v329 = vpack.c.bf16 %v311, %v310
      %v330 = vpack.c.bf16 %v313, %v312
      %v331 = vpack.c.bf16 %v315, %v314
      %v348 = vunpack.c.l.b16 %v316
      %v349 = vunpack.c.h.b16 %v316
      %v350 = vunpack.c.l.b16 %v317
      %v351 = vunpack.c.h.b16 %v317
      %v352 = vunpack.c.l.b16 %v318
      %v353 = vunpack.c.h.b16 %v318
      %v354 = vunpack.c.l.b16 %v319
      %v355 = vunpack.c.h.b16 %v319
      %v356 = vunpack.c.l.b16 %v320
      %v357 = vunpack.c.h.b16 %v320
      %v358 = vunpack.c.l.b16 %v321
      %v359 = vunpack.c.h.b16 %v321
      %v360 = vunpack.c.l.b16 %v322
      %v361 = vunpack.c.h.b16 %v322
      %v362 = vunpack.c.l.b16 %v323
      %v363 = vunpack.c.h.b16 %v323
      %v364 = vunpack.c.l.b16 %v324
      %v365 = vunpack.c.h.b16 %v324
      %v366 = vunpack.c.l.b16 %v325
      %v367 = vunpack.c.h.b16 %v325
      %v368 = vunpack.c.l.b16 %v326
      %v369 = vunpack.c.h.b16 %v326
      %v370 = vunpack.c.l.b16 %v327
      %v371 = vunpack.c.h.b16 %v327
      %v372 = vunpack.c.l.b16 %v328
      %v373 = vunpack.c.h.b16 %v328
      %v374 = vunpack.c.l.b16 %v329
      %v375 = vunpack.c.h.b16 %v329
      %v376 = vunpack.c.l.b16 %v330
      %v377 = vunpack.c.h.b16 %v330
      %v378 = vunpack.c.l.b16 %v331
      %v379 = vunpack.c.h.b16 %v331
      %v380 = vpack.c.b16 %v348, %v348
      %v381 = vpack.c.b16 %v349, %v349
      %v382 = vpack.c.b16 %v350, %v350
      %v383 = vpack.c.b16 %v351, %v351
      %v384 = vpack.c.b16 %v352, %v352
      %v385 = vpack.c.b16 %v353, %v353
      %v386 = vpack.c.b16 %v354, %v354
      %v387 = vpack.c.b16 %v355, %v355
      %v388 = vpack.c.b16 %v356, %v356
      %v389 = vpack.c.b16 %v357, %v357
      %v390 = vpack.c.b16 %v358, %v358
      %v391 = vpack.c.b16 %v359, %v359
      %v392 = vpack.c.b16 %v360, %v360
      %v393 = vpack.c.b16 %v361, %v361
      %v394 = vpack.c.b16 %v362, %v362
      %v395 = vpack.c.b16 %v363, %v363
      %v396 = vpack.c.b16 %v364, %v364
      %v397 = vpack.c.b16 %v365, %v365
      %v398 = vpack.c.b16 %v366, %v366
      %v399 = vpack.c.b16 %v367, %v367
      %v400 = vpack.c.b16 %v368, %v368
      %v401 = vpack.c.b16 %v369, %v369
      %v402 = vpack.c.b16 %v370, %v370
      %v403 = vpack.c.b16 %v371, %v371
      %v404 = vpack.c.b16 %v372, %v372
      %v405 = vpack.c.b16 %v373, %v373
      %v406 = vpack.c.b16 %v374, %v374
      %v407 = vpack.c.b16 %v375, %v375
      %v408 = vpack.c.b16 %v376, %v376
      %v409 = vpack.c.b16 %v377, %v377
      %v410 = vpack.c.b16 %v378, %v378
      %v411 = vpack.c.b16 %v379, %v379
      %444 = vst [vmem:[%s172] sm:$0xf] %v380
      %445 = vst [vmem:[%s172 + $0x4] sm:$0xf] %v381
      %446 = vst [vmem:[%s172 + $0x8] sm:$0xf] %v382
      %447 = vst [vmem:[%s172 + $0xc] sm:$0xf] %v383
      %448 = vst [vmem:[%s172 + $0x10] sm:$0xf] %v384
      %449 = vst [vmem:[%s172 + $0x14] sm:$0xf] %v385
      %450 = vst [vmem:[%s172 + $0x18] sm:$0xf] %v386
      %451 = vst [vmem:[%s172 + $0x1c] sm:$0xf] %v387
      %452 = vst [vmem:[%s172 + $0x20] sm:$0xf] %v388
      %453 = vst [vmem:[%s172 + $0x24] sm:$0xf] %v389
      %454 = vst [vmem:[%s172 + $0x28] sm:$0xf] %v390
      %455 = vst [vmem:[%s172 + $0x2c] sm:$0xf] %v391
      %456 = vst [vmem:[%s172 + $0x30] sm:$0xf] %v392
      %457 = vst [vmem:[%s172 + $0x34] sm:$0xf] %v393
      %458 = vst [vmem:[%s172 + $0x38] sm:$0xf] %v394
      %459 = vst [vmem:[%s172 + $0x3c] sm:$0xf] %v395
      %460 = vst [vmem:[%s172 + $0x40] sm:$0xf] %v396
      %461 = vst [vmem:[%s172 + $0x44] sm:$0xf] %v397
      %462 = vst [vmem:[%s172 + $0x48] sm:$0xf] %v398
      %463 = vst [vmem:[%s172 + $0x4c] sm:$0xf] %v399
      %464 = vst [vmem:[%s172 + $0x50] sm:$0xf] %v400
      %465 = vst [vmem:[%s172 + $0x54] sm:$0xf] %v401
      %466 = vst [vmem:[%s172 + $0x58] sm:$0xf] %v402
      %467 = vst [vmem:[%s172 + $0x5c] sm:$0xf] %v403
      %468 = vst [vmem:[%s172 + $0x60] sm:$0xf] %v404
      %469 = vst [vmem:[%s172 + $0x64] sm:$0xf] %v405
      %470 = vst [vmem:[%s172 + $0x68] sm:$0xf] %v406
      %471 = vst [vmem:[%s172 + $0x6c] sm:$0xf] %v407
      %472 = vst [vmem:[%s172 + $0x70] sm:$0xf] %v408
      %473 = vst [vmem:[%s172 + $0x74] sm:$0xf] %v409
      %474 = vst [vmem:[%s172 + $0x78] sm:$0xf] %v410
      %475 = vst [vmem:[%s172 + $0x7c] sm:$0xf] %v411
      %s476 = smul.u32 32, %s14
      %p477 = scmp.lt.s32.totalorder %s476, 127
      %s478 = scalar_select %p477, %s476, 127
      %s479 = smul.addr %s478, 4
      %s480 = scalar_lea.vmem %s3, %s479
      // Predicated region
      $region33: #{residual_block.5} parent=31 // pred_check
        %p481 = pneg %p100
      $region34: #{residual_block.5} parent=31 // pred_check_branch
        %483 = sbr.rel (%p481) target = $region36
      $region35: #{residual_block.5} parent=31 // pred_region
        %s484 = smul.u32 32, %s14
      $region36: #{residual_block.5} parent=31 // pred_fallthru
        _
    $region32: #{residual_block.5} parent=5 // pred_fallthru
      _
    %p485 = scmp.le.s32.totalorder 2, %s9
    // Predicated region
    $region37: #{residual_block.5} parent=5 // pred_check
      %p486 = pneg %p485
    $region38: #{residual_block.5} parent=5 // pred_check_branch
      %488 = sbr.rel (%p486) target = $region40
    $region39: #{residual_block.5} parent=5 // pred_region
      %s489 = ssub.s32 %s9, 2
      // Predicated region
      $region41: #{residual_block.5} parent=39 // pred_check
        %p490 = pneg %p106
      $region42: #{residual_block.5} parent=39 // pred_check_branch
        %492 = sbr.rel (%p490) target = $region44
      $region43: #{residual_block.5} parent=39 // pred_region
        %s493 = smul.u32 32, %s15
        %p494 = scmp.lt.s32.totalorder %s493, 127
        %s495 = scalar_select %p494, %s493, 127
        %s496 = smul.addr %s495, 4
        %s497 = scalar_lea.vmem %s3, %s496
      $region44: #{residual_block.5} parent=39 // pred_fallthru
        _
    $region40: #{residual_block.5} parent=5 // pred_fallthru
      _
  $region6: #{residual_block.5} parent=0 // loop_footer
    %s13 = sadd.s32 1, %s9
  $region7: #{residual_block.5} parent=0 // loop_footer_branch
    %8 = sbr.rel target = $region3
  $region8: #{residual_block.5} parent=0 // loop_exit
    _

// kernel: residual_block.4
$region0: #{residual_block.4}
  #allocation0 [shape = 'u32[]', space=smem, size = 0x4, offset = 0x4, fixed_abs, tag = 'smem constant byte address 0x4 - core index']
  #allocation1 [shape = 'u32[144,128]{1,0:T(1,128)}', space=vmem, size = 0x12000, scoped, tag = 'internal scratch']
  %s0 = inlined_call_operand.vmem [shape: bf16[1024,256], index: 0, kind: input, shape index: {}]
  %s1 = inlined_call_operand.vmem [shape: bf16[256,128], index: 1, kind: input, shape index: {}]
  %s2 = inlined_call_operand.vmem [shape: f32[1024,128], index: 2, kind: output, shape index: {0}]
  %s3 = inlined_call_operand.vmem [shape: f32[4,2,8,128], index: 3, kind: output, shape index: {1}]
  %4 = xla_tuple %s2, %s3
  %s5 = sld [smem:[#allocation0]]
  $region49: #{residual_block.4} parent=0
    _
  %s7 = ssub.s32 1, %s5
  %s8 = scalar_select 0, %s7, %s5
  loop: start=0, step=1, limit=6
  $region2: #{residual_block.4} parent=0 // loop_pre_header
    _
  $region3: #{residual_block.4} parent=0 // loop_header
    %s10 = sphi 0, %s14
    %p11 = scmp.ge.s32.totalorder %s10, 6
    %s20 = sphi 0, %s22
    %s23 = sphi 0, %s20
    %s24 = sphi 0, %s23
    %s40 = sphi 0, %s24
    %s44 = sphi 0, %s44
    %s46 = sphi 0, %s44
    %s47 = sphi 0, %s46
    %s61 = sphi 0, %s47
    %s67 = sphi 0, %s69
    %s70 = sphi 0, %s67
    %s71 = sphi 0, %s70
    %s87 = sphi 0, %s71
    %s93 = sphi 0, %s95
    %s96 = sphi 0, %s93
    %s97 = sphi 0, %s96
    %s113 = sphi 0, %s97
  $region4: #{residual_block.4} parent=0 // loop_header_branch
    %13 = sbr.rel (%p11) target = $region8
  $region5: #{residual_block.4} parent=0 // loop_body
    %s15 = ssub.s32 %s10, 1
    %s16 = ssub.s32 %s10, 2
    %s17 = sadd.s32 %s10, 1
    %s18 = ssub.s32 %s10, %s17
    %p19 = scmp.eq.s32.totalorder %s18, 0
    %s21 = sadd.s32 %s20, 1
    %s22 = scalar_select %p19, %s20, %s21
    %p25 = pneg %p19
    %p26 = scmp.eq.s32.totalorder %s10, 3
    %p27 = por %p25, %p26
    %p28 = scmp.ne.s32.totalorder %s20, %s23
    %p29 = scmp.eq.s32.totalorder %s10, 0
    %p30 = por %p28, %p29
    %p31 = scmp.ne.s32.totalorder %s20, %s23
    %p32 = scmp.eq.s32.totalorder %s15, 3
    %p33 = por %p31, %p32
    %p34 = scmp.ne.s32.totalorder %s23, %s24
    %p35 = scmp.eq.s32.totalorder %s15, 0
    %p36 = por %p34, %p35
    %p37 = scmp.ne.s32.totalorder %s23, %s24
    %p38 = scmp.eq.s32.totalorder %s16, 3
    %p39 = por %p37, %p38
    %p41 = scmp.ne.s32.totalorder %s24, %s40
    %p42 = scmp.eq.s32.totalorder %s16, 0
    %p43 = por %p41, %p42
    %s45 = sadd.s32 %s44, 1
    %p48 = scmp.eq.s32.totalorder %s10, 3
    %p49 = scmp.ne.s32.totalorder %s44, %s46
    %p50 = scmp.eq.s32.totalorder %s10, 0
    %p51 = por %p49, %p50
    %p52 = scmp.ne.s32.totalorder %s44, %s46
    %p53 = scmp.eq.s32.totalorder %s15, 3
    %p54 = por %p52, %p53
    %p55 = scmp.ne.s32.totalorder %s46, %s47
    %p56 = scmp.eq.s32.totalorder %s15, 0
    %p57 = por %p55, %p56
    %p58 = scmp.ne.s32.totalorder %s46, %s47
    %p59 = scmp.eq.s32.totalorder %s16, 3
    %p60 = por %p58, %p59
    %p62 = scmp.ne.s32.totalorder %s47, %s61
    %p63 = scmp.eq.s32.totalorder %s16, 0
    %p64 = por %p62, %p63
    %s65 = ssub.s32 %s10, %s17
    %p66 = scmp.eq.s32.totalorder %s65, 0
    %s68 = sadd.s32 %s67, 1
    %s69 = scalar_select %p66, %s67, %s68
    %p72 = pneg %p66
    %p73 = scmp.eq.s32.totalorder %s10, 3
    %p74 = por %p72, %p73
    %p75 = scmp.ne.s32.totalorder %s67, %s70
    %p76 = scmp.eq.s32.totalorder %s10, 0
    %p77 = por %p75, %p76
    %p78 = scmp.ne.s32.totalorder %s67, %s70
    %p79 = scmp.eq.s32.totalorder %s15, 3
    %p80 = por %p78, %p79
    %p81 = scmp.ne.s32.totalorder %s70, %s71
    %p82 = scmp.eq.s32.totalorder %s15, 0
    %p83 = por %p81, %p82
    %p84 = scmp.ne.s32.totalorder %s70, %s71
    %p85 = scmp.eq.s32.totalorder %s16, 3
    %p86 = por %p84, %p85
    %p88 = scmp.ne.s32.totalorder %s71, %s87
    %p89 = scmp.eq.s32.totalorder %s16, 0
    %p90 = por %p88, %p89
    %s91 = ssub.s32 %s10, %s17
    %p92 = scmp.eq.s32.totalorder %s91, 0
    %s94 = sadd.s32 %s93, 1
    %s95 = scalar_select %p92, %s93, %s94
    %p98 = pneg %p92
    %p99 = scmp.eq.s32.totalorder %s10, 3
    %p100 = por %p98, %p99
    %p101 = scmp.ne.s32.totalorder %s93, %s96
    %p102 = scmp.eq.s32.totalorder %s10, 0
    %p103 = por %p101, %p102
    %p104 = scmp.ne.s32.totalorder %s93, %s96
    %p105 = scmp.eq.s32.totalorder %s15, 3
    %p106 = por %p104, %p105
    %p107 = scmp.ne.s32.totalorder %s96, %s97
    %p108 = scmp.eq.s32.totalorder %s15, 0
    %p109 = por %p107, %p108
    %p110 = scmp.ne.s32.totalorder %s96, %s97
    %p111 = scmp.eq.s32.totalorder %s16, 3
    %p112 = por %p110, %p111
    %p114 = scmp.ne.s32.totalorder %s97, %s113
    %p115 = scmp.eq.s32.totalorder %s16, 0
    %p116 = por %p114, %p115
    %p117 = scmp.le.s32.totalorder 1, %s10
    %p118 = scmp.lt.s32.totalorder %s10, 5
    %p119 = pnand %p117, %p118
    %p120 = pneg %p119
    // Predicated region
    $region9: #{residual_block.4} parent=5 // pred_check
      _
    $region10: #{residual_block.4} parent=5 // pred_check_branch
      %122 = sbr.rel (%p119) target = $region12
    $region11: #{residual_block.4} parent=5 // pred_region
      %s123 = ssub.s32 %s10, 1
      // Predicated region
      $region13: #{residual_block.4} parent=11 // pred_check
        %p124 = pneg %p57
      $region14: #{residual_block.4} parent=11 // pred_check_branch
        %126 = sbr.rel (%p124) target = $region16
      $region15: #{residual_block.4} parent=11 // pred_region
        _
      $region16: #{residual_block.4} parent=11 // pred_fallthru
        _
    $region12: #{residual_block.4} parent=5 // pred_fallthru
      _
    %p127 = scmp.lt.s32.totalorder %s10, 4
    // Predicated region
    $region17: #{residual_block.4} parent=5 // pred_check
      %p128 = pneg %p127
    $region18: #{residual_block.4} parent=5 // pred_check_branch
      %130 = sbr.rel (%p128) target = $region20
    $region19: #{residual_block.4} parent=5 // pred_region
      // Predicated region
      $region21: #{residual_block.4} parent=19 // pred_check
        %p131 = pneg %p30
      $region22: #{residual_block.4} parent=19 // pred_check_branch
        %133 = sbr.rel (%p131) target = $region24
      $region23: #{residual_block.4} parent=19 // pred_region
        %s134 = smul.u32 32, %s10
        %p135 = scmp.lt.s32.totalorder %s134, 127
        %s136 = scalar_select %p135, %s134, 127
        %s137 = smul.addr %s136, 2
        %s138 = smul.addr %s137, 4
        %s139 = scalar_lea.vmem %s0, %s138
        %s140 = smul.u32 32, %s10
      $region24: #{residual_block.4} parent=19 // pred_fallthru
        _
    $region20: #{residual_block.4} parent=5 // pred_fallthru
      _
    %p141 = scmp.le.s32.totalorder 1, %s10
    %p142 = scmp.lt.s32.totalorder %s10, 5
    %p143 = pnand %p141, %p142
    %p144 = pneg %p143
    // Predicated region
    $region25: #{residual_block.4} parent=5 // pred_check
      _
    $region26: #{residual_block.4} parent=5 // pred_check_branch
      %146 = sbr.rel (%p143) target = $region28
    $region27: #{residual_block.4} parent=5 // pred_region
      %s147 = ssub.s32 %s10, 1
      %s148 = smul.u32 32, %s15
      %p149 = scmp.lt.s32.totalorder %s148, 127
      %s150 = scalar_select %p149, %s148, 127
      %s151 = smul.addr %s150, 2
      %s152 = smul.addr %s151, 4
      %s153 = scalar_lea.vmem %s0, %s152
      %p154 = pneg %p36
      %p155 = pneg %p33
      %p156 = pneg %p57
      %p157 = pneg %p54
      %p158 = pneg %p83
      %p159 = pneg %p80
      %s160 = smul.u32 32, %s15
      %p161 = scmp.lt.s32.totalorder %s160, 127
      %s162 = scalar_select %p161, %s160, 127
      %s163 = smul.addr %s162, 8
      %s164 = scalar_lea.vmem %s2, %s163
      %p165 = pneg %p109
      %p166 = pneg %p106
      %p167 = scmp.lt.s32.totalorder %s15, 3
      %s168 = scalar_select %p167, %s15, 3
      %s169 = smul.addr %s168, 2
      %s170 = smul.addr %s169, 8
      %s171 = scalar_lea.vmem %s3, %s170
      %s172 = smul.u32 32, %s15
      %p173 = scmp.lt.s32.totalorder %s172, 127
      %s174 = scalar_select %p173, %s172, 127
      %s175 = smul.addr %s174, 2
      %s176 = smul.addr %s175, 4
      %s177 = scalar_lea.vmem %s0, %s176
      %s178 = smul.u32 32, %s15
      %s179 = smul.u32 32, %s15
      %p180 = scmp.lt.s32.totalorder %s179, 127
      %s181 = scalar_select %p180, %s179, 127
      %s182 = smul.addr %s181, 8
      %s183 = scalar_lea.vmem %s2, %s182
      %s184 = smul.u32 32, %s15
      %p185 = scmp.lt.s32.totalorder %s15, 3
      %s186 = scalar_select %p185, %s15, 3
      %s187 = smul.addr %s186, 2
      %s188 = smul.addr %s187, 8
      %s189 = scalar_lea.vmem %s3, %s188
      %v191 = vld [vmem:[%s177] sm:$0xff]
      %v192 = vld [vmem:[%s177 + $0x8] sm:$0xff]
      %v193 = vld [vmem:[%s177 + $0x10] sm:$0xff]
      %v194 = vld [vmem:[%s177 + $0x18] sm:$0xff]
      %v195 = vld [vmem:[%s177 + $0x20] sm:$0xff]
      %v196 = vld [vmem:[%s177 + $0x28] sm:$0xff]
      %v197 = vld [vmem:[%s177 + $0x30] sm:$0xff]
      %v198 = vld [vmem:[%s177 + $0x38] sm:$0xff]
      %v199 = vld [vmem:[%s177 + $0x40] sm:$0xff]
      %v200 = vld [vmem:[%s177 + $0x48] sm:$0xff]
      %v201 = vld [vmem:[%s177 + $0x50] sm:$0xff]
      %v202 = vld [vmem:[%s177 + $0x58] sm:$0xff]
      %v203 = vld [vmem:[%s177 + $0x60] sm:$0xff]
      %v204 = vld [vmem:[%s177 + $0x68] sm:$0xff]
      %v205 = vld [vmem:[%s177 + $0x70] sm:$0xff]
      %v206 = vld [vmem:[%s177 + $0x78] sm:$0xff]
      %v207 = vld [vmem:[%s177 + $0x80] sm:$0xff]
      %v208 = vld [vmem:[%s177 + $0x88] sm:$0xff]
      %v209 = vld [vmem:[%s177 + $0x90] sm:$0xff]
      %v210 = vld [vmem:[%s177 + $0x98] sm:$0xff]
      %v211 = vld [vmem:[%s177 + $0xa0] sm:$0xff]
      %v212 = vld [vmem:[%s177 + $0xa8] sm:$0xff]
      %v213 = vld [vmem:[%s177 + $0xb0] sm:$0xff]
      %v214 = vld [vmem:[%s177 + $0xb8] sm:$0xff]
      %v215 = vld [vmem:[%s177 + $0xc0] sm:$0xff]
      %v216 = vld [vmem:[%s177 + $0xc8] sm:$0xff]
      %v217 = vld [vmem:[%s177 + $0xd0] sm:$0xff]
      %v218 = vld [vmem:[%s177 + $0xd8] sm:$0xff]
      %v219 = vld [vmem:[%s177 + $0xe0] sm:$0xff]
      %v220 = vld [vmem:[%s177 + $0xe8] sm:$0xff]
      %v221 = vld [vmem:[%s177 + $0xf0] sm:$0xff]
      %v222 = vld [vmem:[%s177 + $0xf8] sm:$0xff]
      %v223 = vld [vmem:[%s1] sm:$0xf]
      %v224 = vld [vmem:[%s1 + $0x4] sm:$0xf]
      %v225 = vld [vmem:[%s1 + $0x8] sm:$0xf]
      %v226 = vld [vmem:[%s1 + $0xc] sm:$0xf]
      %v227 = vld [vmem:[%s1 + $0x10] sm:$0xf]
      %v228 = vld [vmem:[%s1 + $0x14] sm:$0xf]
      %v229 = vld [vmem:[%s1 + $0x18] sm:$0xf]
      %v230 = vld [vmem:[%s1 + $0x1c] sm:$0xf]
      %v231 = vld [vmem:[%s1 + $0x20] sm:$0xf]
      %v232 = vld [vmem:[%s1 + $0x24] sm:$0xf]
      %v233 = vld [vmem:[%s1 + $0x28] sm:$0xf]
      %v234 = vld [vmem:[%s1 + $0x2c] sm:$0xf]
      %v235 = vld [vmem:[%s1 + $0x30] sm:$0xf]
      %v236 = vld [vmem:[%s1 + $0x34] sm:$0xf]
      %v237 = vld [vmem:[%s1 + $0x38] sm:$0xf]
      %v238 = vld [vmem:[%s1 + $0x3c] sm:$0xf]
      %v239 = vld [vmem:[%s1 + $0x40] sm:$0xf]
      %v240 = vld [vmem:[%s1 + $0x44] sm:$0xf]
      %v241 = vld [vmem:[%s1 + $0x48] sm:$0xf]
      %v242 = vld [vmem:[%s1 + $0x4c] sm:$0xf]
      %v243 = vld [vmem:[%s1 + $0x50] sm:$0xf]
      %v244 = vld [vmem:[%s1 + $0x54] sm:$0xf]
      %v245 = vld [vmem:[%s1 + $0x58] sm:$0xf]
      %v246 = vld [vmem:[%s1 + $0x5c] sm:$0xf]
      %v247 = vld [vmem:[%s1 + $0x60] sm:$0xf]
      %v248 = vld [vmem:[%s1 + $0x64] sm:$0xf]
      %v249 = vld [vmem:[%s1 + $0x68] sm:$0xf]
      %v250 = vld [vmem:[%s1 + $0x6c] sm:$0xf]
      %v251 = vld [vmem:[%s1 + $0x70] sm:$0xf]
      %v252 = vld [vmem:[%s1 + $0x74] sm:$0xf]
      %v253 = vld [vmem:[%s1 + $0x78] sm:$0xf]
      %v254 = vld [vmem:[%s1 + $0x7c] sm:$0xf]
      %v287 = vunpack.c.l.b16 %v191
      %v288 = vunpack.c.h.b16 %v191
      %v289 = vunpack.c.l.b16 %v192
      %v290 = vunpack.c.h.b16 %v192
      %v291 = vunpack.c.l.b16 %v193
      %v292 = vunpack.c.h.b16 %v193
      %v293 = vunpack.c.l.b16 %v194
      %v294 = vunpack.c.h.b16 %v194
      %v295 = vunpack.c.l.b16 %v195
      %v296 = vunpack.c.h.b16 %v195
      %v297 = vunpack.c.l.b16 %v196
      %v298 = vunpack.c.h.b16 %v196
      %v299 = vunpack.c.l.b16 %v197
      %v300 = vunpack.c.h.b16 %v197
      %v301 = vunpack.c.l.b16 %v198
      %v302 = vunpack.c.h.b16 %v198
      %v303 = vunpack.c.l.b16 %v199
      %v304 = vunpack.c.h.b16 %v199
      %v305 = vunpack.c.l.b16 %v200
      %v306 = vunpack.c.h.b16 %v200
      %v307 = vunpack.c.l.b16 %v201
      %v308 = vunpack.c.h.b16 %v201
      %v309 = vunpack.c.l.b16 %v202
      %v310 = vunpack.c.h.b16 %v202
      %v311 = vunpack.c.l.b16 %v203
      %v312 = vunpack.c.h.b16 %v203
      %v313 = vunpack.c.l.b16 %v204
      %v314 = vunpack.c.h.b16 %v204
      %v315 = vunpack.c.l.b16 %v205
      %v316 = vunpack.c.h.b16 %v205
      %v317 = vunpack.c.l.b16 %v206
      %v318 = vunpack.c.h.b16 %v206
      %v319 = vunpack.c.l.b16 %v207
      %v320 = vunpack.c.h.b16 %v207
      %v321 = vunpack.c.l.b16 %v208
      %v322 = vunpack.c.h.b16 %v208
      %v323 = vunpack.c.l.b16 %v209
      %v324 = vunpack.c.h.b16 %v209
      %v325 = vunpack.c.l.b16 %v210
      %v326 = vunpack.c.h.b16 %v210
      %v327 = vunpack.c.l.b16 %v211
      %v328 = vunpack.c.h.b16 %v211
      %v329 = vunpack.c.l.b16 %v212
      %v330 = vunpack.c.h.b16 %v212
      %v331 = vunpack.c.l.b16 %v213
      %v332 = vunpack.c.h.b16 %v213
      %v333 = vunpack.c.l.b16 %v214
      %v334 = vunpack.c.h.b16 %v214
      %v335 = vunpack.c.l.b16 %v215
      %v336 = vunpack.c.h.b16 %v215
      %v337 = vunpack.c.l.b16 %v216
      %v338 = vunpack.c.h.b16 %v216
      %v339 = vunpack.c.l.b16 %v217
      %v340 = vunpack.c.h.b16 %v217
      %v341 = vunpack.c.l.b16 %v218
      %v342 = vunpack.c.h.b16 %v218
      %v343 = vunpack.c.l.b16 %v219
      %v344 = vunpack.c.h.b16 %v219
      %v345 = vunpack.c.l.b16 %v220
      %v346 = vunpack.c.h.b16 %v220
      %v347 = vunpack.c.l.b16 %v221
      %v348 = vunpack.c.h.b16 %v221
      %v349 = vunpack.c.l.b16 %v222
      %v350 = vunpack.c.h.b16 %v222
      %v351 = vpack.c.b16 %v289, %v287
      %v352 = vpack.c.b16 %v290, %v288
      %v353 = vpack.c.b16 %v293, %v291
      %v354 = vpack.c.b16 %v294, %v292
      %v355 = vpack.c.b16 %v297, %v295
      %v356 = vpack.c.b16 %v298, %v296
      %v357 = vpack.c.b16 %v301, %v299
      %v358 = vpack.c.b16 %v302, %v300
      %v359 = vpack.c.b16 %v305, %v303
      %v360 = vpack.c.b16 %v306, %v304
      %v361 = vpack.c.b16 %v309, %v307
      %v362 = vpack.c.b16 %v310, %v308
      %v363 = vpack.c.b16 %v313, %v311
      %v364 = vpack.c.b16 %v314, %v312
      %v365 = vpack.c.b16 %v317, %v315
      %v366 = vpack.c.b16 %v318, %v316
      %v367 = vpack.c.b16 %v321, %v319
      %v368 = vpack.c.b16 %v322, %v320
      %v369 = vpack.c.b16 %v325, %v323
      %v370 = vpack.c.b16 %v326, %v324
      %v371 = vpack.c.b16 %v329, %v327
      %v372 = vpack.c.b16 %v330, %v328
      %v373 = vpack.c.b16 %v333, %v331
      %v374 = vpack.c.b16 %v334, %v332
      %v375 = vpack.c.b16 %v337, %v335
      %v376 = vpack.c.b16 %v338, %v336
      %v377 = vpack.c.b16 %v341, %v339
      %v378 = vpack.c.b16 %v342, %v340
      %v379 = vpack.c.b16 %v345, %v343
      %v380 = vpack.c.b16 %v346, %v344
      %v381 = vpack.c.b16 %v349, %v347
      %v382 = vpack.c.b16 %v350, %v348
      %v447 = vunpack.c.l.b16 %v223
      %v448 = vunpack.c.l.b16 %v224
      %v449 = vunpack.c.l.b16 %v225
      %v450 = vunpack.c.l.b16 %v226
      %v451 = vunpack.c.l.b16 %v227
      %v452 = vunpack.c.l.b16 %v228
      %v453 = vunpack.c.l.b16 %v229
      %v454 = vunpack.c.l.b16 %v230
      %v455 = vunpack.c.l.b16 %v231
      %v456 = vunpack.c.l.b16 %v232
      %v457 = vunpack.c.l.b16 %v233
      %v458 = vunpack.c.l.b16 %v234
      %v459 = vunpack.c.l.b16 %v235
      %v460 = vunpack.c.l.b16 %v236
      %v461 = vunpack.c.l.b16 %v237
      %v462 = vunpack.c.l.b16 %v238
      %v463 = vunpack.c.l.b16 %v239
      %v464 = vunpack.c.l.b16 %v240
      %v465 = vunpack.c.l.b16 %v241
      %v466 = vunpack.c.l.b16 %v242
      %v467 = vunpack.c.l.b16 %v243
      %v468 = vunpack.c.l.b16 %v244
      %v469 = vunpack.c.l.b16 %v245
      %v470 = vunpack.c.l.b16 %v246
      %v471 = vunpack.c.l.b16 %v247
      %v472 = vunpack.c.l.b16 %v248
      %v473 = vunpack.c.l.b16 %v249
      %v474 = vunpack.c.l.b16 %v250
      %v475 = vunpack.c.l.b16 %v251
      %v476 = vunpack.c.l.b16 %v252
      %v477 = vunpack.c.l.b16 %v253
      %v478 = vunpack.c.l.b16 %v254
      %v479 = vpack.c.b16 %v448, %v447
      %v480 = vpack.c.b16 %v450, %v449
      %v481 = vpack.c.b16 %v452, %v451
      %v482 = vpack.c.b16 %v454, %v453
      %v483 = vpack.c.b16 %v456, %v455
      %v484 = vpack.c.b16 %v458, %v457
      %v485 = vpack.c.b16 %v460, %v459
      %v486 = vpack.c.b16 %v462, %v461
      %v487 = vpack.c.b16 %v464, %v463
      %v488 = vpack.c.b16 %v466, %v465
      %v489 = vpack.c.b16 %v468, %v467
      %v490 = vpack.c.b16 %v470, %v469
      %v491 = vpack.c.b16 %v472, %v471
      %v492 = vpack.c.b16 %v474, %v473
      %v493 = vpack.c.b16 %v476, %v475
      %v494 = vpack.c.b16 %v478, %v477
      %511 = vmatprep.subr.bf16.mxu0 0
      %512 = vmatpush1.bf16.msra.mxu0 %v486
      %513 = vmatprep.subr.bf16.mxu0 0
      %514 = vmatpush1.bf16.msra.mxu0 %v485
      %515 = vmatprep.subr.bf16.mxu0 0
      %516 = vmatpush1.bf16.msra.mxu0 %v484
      %517 = vmatprep.subr.bf16.mxu0 0
      %518 = vmatpush1.bf16.msra.mxu0 %v483
      %519 = vmatprep.subr.bf16.mxu0 0
      %520 = vmatpush1.bf16.msra.mxu0 %v482
      %521 = vmatprep.subr.bf16.mxu0 0
      %522 = vmatpush1.bf16.msra.mxu0 %v481
      %523 = vmatprep.subr.bf16.mxu0 0
      %524 = vmatpush1.bf16.msra.mxu0 %v480
      %525 = vmatprep.subr.bf16.mxu0 0
      %526 = vmatpush1.bf16.msra.mxu0 %v479
      %527 = vmatprep.subr.bf16.mxu0 0
      %528 = vmatpush2.bf16.msra.mxu0 %v494
      %529 = vmatprep.subr.bf16.mxu0 0
      %530 = vmatpush2.bf16.msra.mxu0 %v493
      %531 = vmatprep.subr.bf16.mxu0 0
      %532 = vmatpush2.bf16.msra.mxu0 %v492
      %533 = vmatprep.subr.bf16.mxu0 0
      %534 = vmatpush2.bf16.msra.mxu0 %v491
      %535 = vmatprep.subr.bf16.mxu0 0
      %536 = vmatpush2.bf16.msra.mxu0 %v490
      %537 = vmatprep.subr.bf16.mxu0 0
      %538 = vmatpush2.bf16.msra.mxu0 %v489
      %539 = vmatprep.subr.bf16.mxu0 0
      %540 = vmatpush2.bf16.msra.mxu0 %v488
      %541 = vmatprep.subr.bf16.mxu0 0
      %542 = vmatpush2.bf16.msra.mxu0 %v487
      %543 = vmatprep.mubr.bf16.mxu0 %v352
      %544 = vmatmul.mubr.bf16.gmra.mxu0 %v351
      %v545 = vpop.f32.mrf.mxu0
      %v546 = vadd.f32 0.0, %v545
      %v547 = vpop.f32.mrf.mxu0
      %v548 = vpop.f32.mrf.mxu0
      %v549 = vadd.f32 0.0, %v548
      %v550 = vpop.f32.mrf.mxu0
      %551 = vmatprep.mubr.bf16.mxu0 %v354
      %552 = vmatmul.mubr.bf16.gmra.mxu0 %v353
      %v553 = vpop.f32.mrf.mxu0
      %v554 = vadd.f32 0.0, %v553
      %v555 = vpop.f32.mrf.mxu0
      %v556 = vpop.f32.mrf.mxu0
      %v557 = vadd.f32 0.0, %v556
      %v558 = vpop.f32.mrf.mxu0
      %559 = vmatprep.mubr.bf16.mxu0 %v356
      %560 = vmatmul.mubr.bf16.gmra.mxu0 %v355
      %v561 = vpop.f32.mrf.mxu0
      %v562 = vadd.f32 0.0, %v561
      %v563 = vpop.f32.mrf.mxu0
      %v564 = vpop.f32.mrf.mxu0
      %v565 = vadd.f32 0.0, %v564
      %v566 = vpop.f32.mrf.mxu0
      %567 = vmatprep.mubr.bf16.mxu0 %v358
      %568 = vmatmul.mubr.bf16.gmra.mxu0 %v357
      %v569 = vpop.f32.mrf.mxu0
      %v570 = vadd.f32 0.0, %v569
      %v571 = vpop.f32.mrf.mxu0
      %v572 = vpop.f32.mrf.mxu0
      %v573 = vadd.f32 0.0, %v572
      %v574 = vpop.f32.mrf.mxu0
      %575 = vmatprep.mubr.bf16.mxu0 %v360
      %576 = vmatmul.mubr.bf16.gmra.mxu0 %v359
      %v577 = vpop.f32.mrf.mxu0
      %v578 = vadd.f32 0.0, %v577
      %v579 = vpop.f32.mrf.mxu0
      %v580 = vpop.f32.mrf.mxu0
      %v581 = vadd.f32 0.0, %v580
      %v582 = vpop.f32.mrf.mxu0
      %583 = vmatprep.mubr.bf16.mxu0 %v362
      %584 = vmatmul.mubr.bf16.gmra.mxu0 %v361
      %v585 = vpop.f32.mrf.mxu0
      %v586 = vadd.f32 0.0, %v585
      %v587 = vpop.f32.mrf.mxu0
      %v588 = vpop.f32.mrf.mxu0
      %v589 = vadd.f32 0.0, %v588
      %v590 = vpop.f32.mrf.mxu0
      %591 = vmatprep.mubr.bf16.mxu0 %v364
      %592 = vmatmul.mubr.bf16.gmra.mxu0 %v363
      %v593 = vpop.f32.mrf.mxu0
      %v594 = vadd.f32 0.0, %v593
      %v595 = vpop.f32.mrf.mxu0
      %v596 = vpop.f32.mrf.mxu0
      %v597 = vadd.f32 0.0, %v596
      %v598 = vpop.f32.mrf.mxu0
      %599 = vmatprep.mubr.bf16.mxu0 %v366
      %600 = vmatmul.mubr.bf16.gmra.mxu0 %v365
      %v601 = vpop.f32.mrf.mxu0
      %v602 = vadd.f32 0.0, %v601
      %v603 = vpop.f32.mrf.mxu0
      %v604 = vpop.f32.mrf.mxu0
      %v605 = vadd.f32 0.0, %v604
      %v606 = vpop.f32.mrf.mxu0
      %607 = vmatprep.mubr.bf16.mxu0 %v368
      %608 = vmatmul.mubr.bf16.gmra.mxu0 %v367
      %v609 = vpop.f32.mrf.mxu0
      %v610 = vadd.f32 0.0, %v609
      %v611 = vpop.f32.mrf.mxu0
      %v612 = vpop.f32.mrf.mxu0
      %v613 = vadd.f32 0.0, %v612
      %v614 = vpop.f32.mrf.mxu0
      %615 = vmatprep.mubr.bf16.mxu0 %v370
      %616 = vmatmul.mubr.bf16.gmra.mxu0 %v369
      %v617 = vpop.f32.mrf.mxu0
      %v618 = vadd.f32 0.0, %v617
      %v619 = vpop.f32.mrf.mxu0
      %v620 = vpop.f32.mrf.mxu0
      %v621 = vadd.f32 0.0, %v620
      %v622 = vpop.f32.mrf.mxu0
      %623 = vmatprep.mubr.bf16.mxu0 %v372
      %624 = vmatmul.mubr.bf16.gmra.mxu0 %v371
      %v625 = vpop.f32.mrf.mxu0
      %v626 = vadd.f32 0.0, %v625
      %v627 = vpop.f32.mrf.mxu0
      %v628 = vpop.f32.mrf.mxu0
      %v629 = vadd.f32 0.0, %v628
      %v630 = vpop.f32.mrf.mxu0
      %631 = vmatprep.mubr.bf16.mxu0 %v374
      %632 = vmatmul.mubr.bf16.gmra.mxu0 %v373
      %v633 = vpop.f32.mrf.mxu0
      %v634 = vadd.f32 0.0, %v633
      %v635 = vpop.f32.mrf.mxu0
      %v636 = vpop.f32.mrf.mxu0
      %v637 = vadd.f32 0.0, %v636
      %v638 = vpop.f32.mrf.mxu0
      %639 = vmatprep.mubr.bf16.mxu0 %v376
      %640 = vmatmul.mubr.bf16.gmra.mxu0 %v375
      %v641 = vpop.f32.mrf.mxu0
      %v642 = vadd.f32 0.0, %v641
      %v643 = vpop.f32.mrf.mxu0
      %v644 = vpop.f32.mrf.mxu0
      %v645 = vadd.f32 0.0, %v644
      %v646 = vpop.f32.mrf.mxu0
      %647 = vmatprep.mubr.bf16.mxu0 %v378
      %648 = vmatmul.mubr.bf16.gmra.mxu0 %v377
      %v649 = vpop.f32.mrf.mxu0
      %v650 = vadd.f32 0.0, %v649
      %v651 = vpop.f32.mrf.mxu0
      %v652 = vpop.f32.mrf.mxu0
      %v653 = vadd.f32 0.0, %v652
      %v654 = vpop.f32.mrf.mxu0
      %655 = vmatprep.mubr.bf16.mxu0 %v380
      %656 = vmatmul.mubr.bf16.gmra.mxu0 %v379
      %v657 = vpop.f32.mrf.mxu0
      %v658 = vadd.f32 0.0, %v657
      %v659 = vpop.f32.mrf.mxu0
      %v660 = vpop.f32.mrf.mxu0
      %v661 = vadd.f32 0.0, %v660
      %v662 = vpop.f32.mrf.mxu0
      %663 = vmatprep.mubr.bf16.mxu0 %v382
      %664 = vmatmul.mubr.bf16.gmra.mxu0 %v381
      %v665 = vpop.f32.mrf.mxu0
      %v666 = vadd.f32 0.0, %v665
      %v667 = vpop.f32.mrf.mxu0
      %v668 = vpop.f32.mrf.mxu0
      %v669 = vadd.f32 0.0, %v668
      %v670 = vpop.f32.mrf.mxu0
      %671 = vdwg.mxu0
      %672 = vst [vmem:[%s183] sm:$0xff] %v546
      %673 = vst [vmem:[%s183 + $0x8] sm:$0xff] %v549
      %674 = vst [vmem:[%s183 + $0x10] sm:$0xff] %v554
      %675 = vst [vmem:[%s183 + $0x18] sm:$0xff] %v557
      %676 = vst [vmem:[%s183 + $0x20] sm:$0xff] %v562
      %677 = vst [vmem:[%s183 + $0x28] sm:$0xff] %v565
      %678 = vst [vmem:[%s183 + $0x30] sm:$0xff] %v570
      %679 = vst [vmem:[%s183 + $0x38] sm:$0xff] %v573
      %680 = vst [vmem:[%s183 + $0x40] sm:$0xff] %v578
      %681 = vst [vmem:[%s183 + $0x48] sm:$0xff] %v581
      %682 = vst [vmem:[%s183 + $0x50] sm:$0xff] %v586
      %683 = vst [vmem:[%s183 + $0x58] sm:$0xff] %v589
      %684 = vst [vmem:[%s183 + $0x60] sm:$0xff] %v594
      %685 = vst [vmem:[%s183 + $0x68] sm:$0xff] %v597
      %686 = vst [vmem:[%s183 + $0x70] sm:$0xff] %v602
      %687 = vst [vmem:[%s183 + $0x78] sm:$0xff] %v605
      %688 = vst [vmem:[%s183 + $0x80] sm:$0xff] %v610
      %689 = vst [vmem:[%s183 + $0x88] sm:$0xff] %v613
      %690 = vst [vmem:[%s183 + $0x90] sm:$0xff] %v618
      %691 = vst [vmem:[%s183 + $0x98] sm:$0xff] %v621
      %692 = vst [vmem:[%s183 + $0xa0] sm:$0xff] %v626
      %693 = vst [vmem:[%s183 + $0xa8] sm:$0xff] %v629
      %694 = vst [vmem:[%s183 + $0xb0] sm:$0xff] %v634
      %695 = vst [vmem:[%s183 + $0xb8] sm:$0xff] %v637
      %696 = vst [vmem:[%s183 + $0xc0] sm:$0xff] %v642
      %697 = vst [vmem:[%s183 + $0xc8] sm:$0xff] %v645
      %698 = vst [vmem:[%s183 + $0xd0] sm:$0xff] %v650
      %699 = vst [vmem:[%s183 + $0xd8] sm:$0xff] %v653
      %700 = vst [vmem:[%s183 + $0xe0] sm:$0xff] %v658
      %701 = vst [vmem:[%s183 + $0xe8] sm:$0xff] %v661
      %702 = vst [vmem:[%s183 + $0xf0] sm:$0xff] %v666
      %703 = vst [vmem:[%s183 + $0xf8] sm:$0xff] %v669
      %v704 = vadd.f32 %v546, %v549
      %v705 = vadd.f32 %v704, %v554
      %v706 = vadd.f32 %v705, %v557
      %v707 = vadd.f32 %v706, %v562
      %v708 = vadd.f32 %v707, %v565
      %v709 = vadd.f32 %v708, %v570
      %v710 = vadd.f32 %v709, %v573
      %v711 = vadd.f32 %v710, %v578
      %v712 = vadd.f32 %v711, %v581
      %v713 = vadd.f32 %v712, %v586
      %v714 = vadd.f32 %v713, %v589
      %v715 = vadd.f32 %v714, %v594
      %v716 = vadd.f32 %v715, %v597
      %v717 = vadd.f32 %v716, %v602
      %v718 = vadd.f32 %v717, %v605
      %v719 = vadd.f32 %v718, %v610
      %v720 = vadd.f32 %v719, %v613
      %v721 = vadd.f32 %v720, %v618
      %v722 = vadd.f32 %v721, %v621
      %v723 = vadd.f32 %v722, %v626
      %v724 = vadd.f32 %v723, %v629
      %v725 = vadd.f32 %v724, %v634
      %v726 = vadd.f32 %v725, %v637
      %v727 = vadd.f32 %v726, %v642
      %v728 = vadd.f32 %v727, %v645
      %v729 = vadd.f32 %v728, %v650
      %v730 = vadd.f32 %v729, %v653
      %v731 = vadd.f32 %v730, %v658
      %v732 = vadd.f32 %v731, %v661
      %v733 = vadd.f32 %v732, %v666
      %v734 = vadd.f32 %v733, %v669
      %v735 = vrot.slane %v734, 4
      %v736 = vadd.f32 %v734, %v735
      %v737 = vrot.slane %v736, 2
      %v738 = vadd.f32 %v736, %v737
      %v739 = vrot.slane %v738, 1
      %v740 = vadd.f32 %v738, %v739
      %741 = vst [vmem:[%s189] sm:$0xff] %v740
      %v742 = vmul.f32 %v546, %v546
      %v743 = vmul.f32 %v549, %v549
      %v744 = vmul.f32 %v554, %v554
      %v745 = vmul.f32 %v557, %v557
      %v746 = vmul.f32 %v562, %v562
      %v747 = vmul.f32 %v565, %v565
      %v748 = vmul.f32 %v570, %v570
      %v749 = vmul.f32 %v573, %v573
      %v750 = vmul.f32 %v578, %v578
      %v751 = vmul.f32 %v581, %v581
      %v752 = vmul.f32 %v586, %v586
      %v753 = vmul.f32 %v589, %v589
      %v754 = vmul.f32 %v594, %v594
      %v755 = vmul.f32 %v597, %v597
      %v756 = vmul.f32 %v602, %v602
      %v757 = vmul.f32 %v605, %v605
      %v758 = vmul.f32 %v610, %v610
      %v759 = vmul.f32 %v613, %v613
      %v760 = vmul.f32 %v618, %v618
      %v761 = vmul.f32 %v621, %v621
      %v762 = vmul.f32 %v626, %v626
      %v763 = vmul.f32 %v629, %v629
      %v764 = vmul.f32 %v634, %v634
      %v765 = vmul.f32 %v637, %v637
      %v766 = vmul.f32 %v642, %v642
      %v767 = vmul.f32 %v645, %v645
      %v768 = vmul.f32 %v650, %v650
      %v769 = vmul.f32 %v653, %v653
      %v770 = vmul.f32 %v658, %v658
      %v771 = vmul.f32 %v661, %v661
      %v772 = vmul.f32 %v666, %v666
      %v773 = vmul.f32 %v669, %v669
      %v774 = vadd.f32 %v742, %v743
      %v775 = vadd.f32 %v774, %v744
      %v776 = vadd.f32 %v775, %v745
      %v777 = vadd.f32 %v776, %v746
      %v778 = vadd.f32 %v777, %v747
      %v779 = vadd.f32 %v778, %v748
      %v780 = vadd.f32 %v779, %v749
      %v781 = vadd.f32 %v780, %v750
      %v782 = vadd.f32 %v781, %v751
      %v783 = vadd.f32 %v782, %v752
      %v784 = vadd.f32 %v783, %v753
      %v785 = vadd.f32 %v784, %v754
      %v786 = vadd.f32 %v785, %v755
      %v787 = vadd.f32 %v786, %v756
      %v788 = vadd.f32 %v787, %v757
      %v789 = vadd.f32 %v788, %v758
      %v790 = vadd.f32 %v789, %v759
      %v791 = vadd.f32 %v790, %v760
      %v792 = vadd.f32 %v791, %v761
      %v793 = vadd.f32 %v792, %v762
      %v794 = vadd.f32 %v793, %v763
      %v795 = vadd.f32 %v794, %v764
      %v796 = vadd.f32 %v795, %v765
      %v797 = vadd.f32 %v796, %v766
      %v798 = vadd.f32 %v797, %v767
      %v799 = vadd.f32 %v798, %v768
      %v800 = vadd.f32 %v799, %v769
      %v801 = vadd.f32 %v800, %v770
      %v802 = vadd.f32 %v801, %v771
      %v803 = vadd.f32 %v802, %v772
      %v804 = vadd.f32 %v803, %v773
      %v805 = vrot.slane %v804, 4
      %v806 = vadd.f32 %v804, %v805
      %v807 = vrot.slane %v806, 2
      %v808 = vadd.f32 %v806, %v807
      %v809 = vrot.slane %v808, 1
      %v810 = vadd.f32 %v808, %v809
      %s811 = scalar_lea.vmem %s189, 8
      %812 = vst [vmem:[%s811] sm:$0xff] %v810
      %s813 = smul.u32 32, %s15
      %p814 = scmp.lt.s32.totalorder %s813, 127
      %s815 = scalar_select %p814, %s813, 127
      %s816 = smul.addr %s815, 8
      %s817 = scalar_lea.vmem %s2, %s816
      %p818 = scmp.lt.s32.totalorder %s15, 3
      %s819 = scalar_select %p818, %s15, 3
      %s820 = smul.addr %s819, 2
      %s821 = smul.addr %s820, 8
      %s822 = scalar_lea.vmem %s3, %s821
      // Predicated region
      $region29: #{residual_block.4} parent=27 // pred_check
        %p823 = pneg %p80
      $region30: #{residual_block.4} parent=27 // pred_check_branch
        %825 = sbr.rel (%p823) target = $region32
      $region31: #{residual_block.4} parent=27 // pred_region
        %s826 = smul.u32 32, %s15
      $region32: #{residual_block.4} parent=27 // pred_fallthru
        _
      // Predicated region
      $region33: #{residual_block.4} parent=27 // pred_check
        %p827 = pneg %p106
      $region34: #{residual_block.4} parent=27 // pred_check_branch
        %829 = sbr.rel (%p827) target = $region36
      $region35: #{residual_block.4} parent=27 // pred_region
        _
      $region36: #{residual_block.4} parent=27 // pred_fallthru
        _
    $region28: #{residual_block.4} parent=5 // pred_fallthru
      _
    %p830 = scmp.le.s32.totalorder 2, %s10
    // Predicated region
    $region37: #{residual_block.4} parent=5 // pred_check
      %p831 = pneg %p830
    $region38: #{residual_block.4} parent=5 // pred_check_branch
      %833 = sbr.rel (%p831) target = $region40
    $region39: #{residual_block.4} parent=5 // pred_region
      %s834 = ssub.s32 %s10, 2
      // Predicated region
      $region41: #{residual_block.4} parent=39 // pred_check
        %p835 = pneg %p86
      $region42: #{residual_block.4} parent=39 // pred_check_branch
        %837 = sbr.rel (%p835) target = $region44
      $region43: #{residual_block.4} parent=39 // pred_region
        %s838 = smul.u32 32, %s16
        %p839 = scmp.lt.s32.totalorder %s838, 127
        %s840 = scalar_select %p839, %s838, 127
        %s841 = smul.addr %s840, 8
        %s842 = scalar_lea.vmem %s2, %s841
      $region44: #{residual_block.4} parent=39 // pred_fallthru
        _
      // Predicated region
      $region45: #{residual_block.4} parent=39 // pred_check
        %p843 = pneg %p112
      $region46: #{residual_block.4} parent=39 // pred_check_branch
        %845 = sbr.rel (%p843) target = $region48
      $region47: #{residual_block.4} parent=39 // pred_region
        %p846 = scmp.lt.s32.totalorder %s16, 3
        %s847 = scalar_select %p846, %s16, 3
        %s848 = smul.addr %s847, 2
        %s849 = smul.addr %s848, 8
        %s850 = scalar_lea.vmem %s3, %s849
      $region48: #{residual_block.4} parent=39 // pred_fallthru
        _
    $region40: #{residual_block.4} parent=5 // pred_fallthru
      _
  $region6: #{residual_block.4} parent=0 // loop_footer
    %s14 = sadd.s32 1, %s10
  $region7: #{residual_block.4} parent=0 // loop_footer_branch
    %9 = sbr.rel target = $region3
  $region8: #{residual_block.4} parent=0 // loop_exit
    _

// kernel: residual_block.7
$region0: #{residual_block.7}
  #allocation0 [shape = 'u32[]', space=smem, size = 0x4, offset = 0x4, fixed_abs, tag = 'smem constant byte address 0x4 - core index']
  #allocation1 [shape = 'u32[144,128]{1,0:T(1,128)}', space=vmem, size = 0x12000, scoped, tag = 'internal scratch']
  %s0 = inlined_call_operand.vmem [shape: f32[1024,128], index: 0, kind: input, shape index: {}]
  %s1 = inlined_call_operand.vmem [shape: f32[1024,128], index: 1, kind: input, shape index: {}]
  %s2 = inlined_call_operand.vmem [shape: f32[1,128], index: 2, kind: input, shape index: {}]
  %s3 = inlined_call_operand.vmem [shape: f32[1,128], index: 3, kind: input, shape index: {}]
  %s4 = inlined_call_operand.vmem [shape: f32[1024,128], index: 4, kind: output, shape index: {}]
  %s5 = sld [smem:[#allocation0]]
  $region49: #{residual_block.7} parent=0
    _
  %s7 = ssub.s32 1, %s5
  %s8 = scalar_select 0, %s7, %s5
  loop: start=0, step=1, limit=6
  $region2: #{residual_block.7} parent=0 // loop_pre_header
    _
  $region3: #{residual_block.7} parent=0 // loop_header
    %s10 = sphi 0, %s14
    %p11 = scmp.ge.s32.totalorder %s10, 6
    %s20 = sphi 0, %s22
    %s23 = sphi 0, %s20
    %s24 = sphi 0, %s23
    %s40 = sphi 0, %s24
    %s46 = sphi 0, %s48
    %s49 = sphi 0, %s46
    %s50 = sphi 0, %s49
    %s66 = sphi 0, %s50
    %s70 = sphi 0, %s70
    %s72 = sphi 0, %s70
    %s73 = sphi 0, %s72
    %s87 = sphi 0, %s73
    %s91 = sphi 0, %s91
    %s93 = sphi 0, %s91
    %s94 = sphi 0, %s93
    %s108 = sphi 0, %s94
    %s114 = sphi 0, %s116
    %s117 = sphi 0, %s114
    %s118 = sphi 0, %s117
    %s134 = sphi 0, %s118
  $region4: #{residual_block.7} parent=0 // loop_header_branch
    %13 = sbr.rel (%p11) target = $region8
  $region5: #{residual_block.7} parent=0 // loop_body
    %s15 = ssub.s32 %s10, 1
    %s16 = ssub.s32 %s10, 2
    %s17 = sadd.s32 %s10, 1
    %s18 = ssub.s32 %s10, %s17
    %p19 = scmp.eq.s32.totalorder %s18, 0
    %s21 = sadd.s32 %s20, 1
    %s22 = scalar_select %p19, %s20, %s21
    %p25 = pneg %p19
    %p26 = scmp.eq.s32.totalorder %s10, 3
    %p27 = por %p25, %p26
    %p28 = scmp.ne.s32.totalorder %s20, %s23
    %p29 = scmp.eq.s32.totalorder %s10, 0
    %p30 = por %p28, %p29
    %p31 = scmp.ne.s32.totalorder %s20, %s23
    %p32 = scmp.eq.s32.totalorder %s15, 3
    %p33 = por %p31, %p32
    %p34 = scmp.ne.s32.totalorder %s23, %s24
    %p35 = scmp.eq.s32.totalorder %s15, 0
    %p36 = por %p34, %p35
    %p37 = scmp.ne.s32.totalorder %s23, %s24
    %p38 = scmp.eq.s32.totalorder %s16, 3
    %p39 = por %p37, %p38
    %p41 = scmp.ne.s32.totalorder %s24, %s40
    %p42 = scmp.eq.s32.totalorder %s16, 0
    %p43 = por %p41, %p42
    %s44 = ssub.s32 %s10, %s17
    %p45 = scmp.eq.s32.totalorder %s44, 0
    %s47 = sadd.s32 %s46, 1
    %s48 = scalar_select %p45, %s46, %s47
    %p51 = pneg %p45
    %p52 = scmp.eq.s32.totalorder %s10, 3
    %p53 = por %p51, %p52
    %p54 = scmp.ne.s32.totalorder %s46, %s49
    %p55 = scmp.eq.s32.totalorder %s10, 0
    %p56 = por %p54, %p55
    %p57 = scmp.ne.s32.totalorder %s46, %s49
    %p58 = scmp.eq.s32.totalorder %s15, 3
    %p59 = por %p57, %p58
    %p60 = scmp.ne.s32.totalorder %s49, %s50
    %p61 = scmp.eq.s32.totalorder %s15, 0
    %p62 = por %p60, %p61
    %p63 = scmp.ne.s32.totalorder %s49, %s50
    %p64 = scmp.eq.s32.totalorder %s16, 3
    %p65 = por %p63, %p64
    %p67 = scmp.ne.s32.totalorder %s50, %s66
    %p68 = scmp.eq.s32.totalorder %s16, 0
    %p69 = por %p67, %p68
    %s71 = sadd.s32 %s70, 1
    %p74 = scmp.eq.s32.totalorder %s10, 3
    %p75 = scmp.ne.s32.totalorder %s70, %s72
    %p76 = scmp.eq.s32.totalorder %s10, 0
    %p77 = por %p75, %p76
    %p78 = scmp.ne.s32.totalorder %s70, %s72
    %p79 = scmp.eq.s32.totalorder %s15, 3
    %p80 = por %p78, %p79
    %p81 = scmp.ne.s32.totalorder %s72, %s73
    %p82 = scmp.eq.s32.totalorder %s15, 0
    %p83 = por %p81, %p82
    %p84 = scmp.ne.s32.totalorder %s72, %s73
    %p85 = scmp.eq.s32.totalorder %s16, 3
    %p86 = por %p84, %p85
    %p88 = scmp.ne.s32.totalorder %s73, %s87
    %p89 = scmp.eq.s32.totalorder %s16, 0
    %p90 = por %p88, %p89
    %s92 = sadd.s32 %s91, 1
    %p95 = scmp.eq.s32.totalorder %s10, 3
    %p96 = scmp.ne.s32.totalorder %s91, %s93
    %p97 = scmp.eq.s32.totalorder %s10, 0
    %p98 = por %p96, %p97
    %p99 = scmp.ne.s32.totalorder %s91, %s93
    %p100 = scmp.eq.s32.totalorder %s15, 3
    %p101 = por %p99, %p100
    %p102 = scmp.ne.s32.totalorder %s93, %s94
    %p103 = scmp.eq.s32.totalorder %s15, 0
    %p104 = por %p102, %p103
    %p105 = scmp.ne.s32.totalorder %s93, %s94
    %p106 = scmp.eq.s32.totalorder %s16, 3
    %p107 = por %p105, %p106
    %p109 = scmp.ne.s32.totalorder %s94, %s108
    %p110 = scmp.eq.s32.totalorder %s16, 0
    %p111 = por %p109, %p110
    %s112 = ssub.s32 %s10, %s17
    %p113 = scmp.eq.s32.totalorder %s112, 0
    %s115 = sadd.s32 %s114, 1
    %s116 = scalar_select %p113, %s114, %s115
    %p119 = pneg %p113
    %p120 = scmp.eq.s32.totalorder %s10, 3
    %p121 = por %p119, %p120
    %p122 = scmp.ne.s32.totalorder %s114, %s117
    %p123 = scmp.eq.s32.totalorder %s10, 0
    %p124 = por %p122, %p123
    %p125 = scmp.ne.s32.totalorder %s114, %s117
    %p126 = scmp.eq.s32.totalorder %s15, 3
    %p127 = por %p125, %p126
    %p128 = scmp.ne.s32.totalorder %s117, %s118
    %p129 = scmp.eq.s32.totalorder %s15, 0
    %p130 = por %p128, %p129
    %p131 = scmp.ne.s32.totalorder %s117, %s118
    %p132 = scmp.eq.s32.totalorder %s16, 3
    %p133 = por %p131, %p132
    %p135 = scmp.ne.s32.totalorder %s118, %s134
    %p136 = scmp.eq.s32.totalorder %s16, 0
    %p137 = por %p135, %p136
    %p138 = scmp.le.s32.totalorder 1, %s10
    %p139 = scmp.lt.s32.totalorder %s10, 5
    %p140 = pnand %p138, %p139
    %p141 = pneg %p140
    // Predicated region
    $region9: #{residual_block.7} parent=5 // pred_check
      _
    $region10: #{residual_block.7} parent=5 // pred_check_branch
      %143 = sbr.rel (%p140) target = $region12
    $region11: #{residual_block.7} parent=5 // pred_region
      %s144 = ssub.s32 %s10, 1
      // Predicated region
      $region13: #{residual_block.7} parent=11 // pred_check
        %p145 = pneg %p83
      $region14: #{residual_block.7} parent=11 // pred_check_branch
        %147 = sbr.rel (%p145) target = $region16
      $region15: #{residual_block.7} parent=11 // pred_region
        _
      $region16: #{residual_block.7} parent=11 // pred_fallthru
        _
      // Predicated region
      $region17: #{residual_block.7} parent=11 // pred_check
        %p148 = pneg %p104
      $region18: #{residual_block.7} parent=11 // pred_check_branch
        %150 = sbr.rel (%p148) target = $region20
      $region19: #{residual_block.7} parent=11 // pred_region
        _
      $region20: #{residual_block.7} parent=11 // pred_fallthru
        _
    $region12: #{residual_block.7} parent=5 // pred_fallthru
      _
    %p151 = scmp.lt.s32.totalorder %s10, 4
    // Predicated region
    $region21: #{residual_block.7} parent=5 // pred_check
      %p152 = pneg %p151
    $region22: #{residual_block.7} parent=5 // pred_check_branch
      %154 = sbr.rel (%p152) target = $region24
    $region23: #{residual_block.7} parent=5 // pred_region
      // Predicated region
      $region25: #{residual_block.7} parent=23 // pred_check
        %p155 = pneg %p30
      $region26: #{residual_block.7} parent=23 // pred_check_branch
        %157 = sbr.rel (%p155) target = $region28
      $region27: #{residual_block.7} parent=23 // pred_region
        %s158 = smul.u32 32, %s10
        %p159 = scmp.lt.s32.totalorder %s158, 127
        %s160 = scalar_select %p159, %s158, 127
        %s161 = smul.addr %s160, 8
        %s162 = scalar_lea.vmem %s0, %s161
        %s163 = smul.u32 32, %s10
      $region28: #{residual_block.7} parent=23 // pred_fallthru
        _
      // Predicated region
      $region29: #{residual_block.7} parent=23 // pred_check
        %p164 = pneg %p56
      $region30: #{residual_block.7} parent=23 // pred_check_branch
        %166 = sbr.rel (%p164) target = $region32
      $region31: #{residual_block.7} parent=23 // pred_region
        %s167 = smul.u32 32, %s10
        %p168 = scmp.lt.s32.totalorder %s167, 127
        %s169 = scalar_select %p168, %s167, 127
        %s170 = smul.addr %s169, 8
        %s171 = scalar_lea.vmem %s1, %s170
        %s172 = smul.u32 32, %s10
      $region32: #{residual_block.7} parent=23 // pred_fallthru
        _
    $region24: #{residual_block.7} parent=5 // pred_fallthru
      _
    %p173 = scmp.le.s32.totalorder 1, %s10
    %p174 = scmp.lt.s32.totalorder %s10, 5
    %p175 = pnand %p173, %p174
    %p176 = pneg %p175
    // Predicated region
    $region33: #{residual_block.7} parent=5 // pred_check
      _
    $region34: #{residual_block.7} parent=5 // pred_check_branch
      %178 = sbr.rel (%p175) target = $region36
    $region35: #{residual_block.7} parent=5 // pred_region
      %s179 = ssub.s32 %s10, 1
      %s180 = smul.u32 32, %s15
      %p181 = scmp.lt.s32.totalorder %s180, 127
      %s182 = scalar_select %p181, %s180, 127
      %s183 = smul.addr %s182, 8
      %s184 = scalar_lea.vmem %s0, %s183
      %p185 = pneg %p36
      %p186 = pneg %p33
      %s187 = smul.u32 32, %s15
      %p188 = scmp.lt.s32.totalorder %s187, 127
      %s189 = scalar_select %p188, %s187, 127
      %s190 = smul.addr %s189, 8
      %s191 = scalar_lea.vmem %s1, %s190
      %p192 = pneg %p62
      %p193 = pneg %p59
      %p194 = pneg %p83
      %p195 = pneg %p80
      %p196 = pneg %p104
      %p197 = pneg %p101
      %p198 = pneg %p130
      %p199 = pneg %p127
      %s200 = smul.u32 32, %s15
      %p201 = scmp.lt.s32.totalorder %s200, 127
      %s202 = scalar_select %p201, %s200, 127
      %s203 = smul.addr %s202, 8
      %s204 = scalar_lea.vmem %s4, %s203
      %s205 = smul.u32 32, %s15
      %p206 = scmp.lt.s32.totalorder %s205, 127
      %s207 = scalar_select %p206, %s205, 127
      %s208 = smul.addr %s207, 8
      %s209 = scalar_lea.vmem %s0, %s208
      %s210 = smul.u32 32, %s15
      %s211 = smul.u32 32, %s15
      %p212 = scmp.lt.s32.totalorder %s211, 127
      %s213 = scalar_select %p212, %s211, 127
      %s214 = smul.addr %s213, 8
      %s215 = scalar_lea.vmem %s1, %s214
      %s216 = smul.u32 32, %s15
      %s217 = smul.u32 32, %s15
      %p218 = scmp.lt.s32.totalorder %s217, 127
      %s219 = scalar_select %p218, %s217, 127
      %s220 = smul.addr %s219, 8
      %s221 = scalar_lea.vmem %s4, %s220
      %s222 = smul.u32 32, %s15
      %v223 = vld [vmem:[%s209] sm:$0xff]
      %v224 = vld [vmem:[%s209 + $0x8] sm:$0xff]
      %v225 = vld [vmem:[%s209 + $0x10] sm:$0xff]
      %v226 = vld [vmem:[%s209 + $0x18] sm:$0xff]
      %v227 = vld [vmem:[%s209 + $0x20] sm:$0xff]
      %v228 = vld [vmem:[%s209 + $0x28] sm:$0xff]
      %v229 = vld [vmem:[%s209 + $0x30] sm:$0xff]
      %v230 = vld [vmem:[%s209 + $0x38] sm:$0xff]
      %v231 = vld [vmem:[%s209 + $0x40] sm:$0xff]
      %v232 = vld [vmem:[%s209 + $0x48] sm:$0xff]
      %v233 = vld [vmem:[%s209 + $0x50] sm:$0xff]
      %v234 = vld [vmem:[%s209 + $0x58] sm:$0xff]
      %v235 = vld [vmem:[%s209 + $0x60] sm:$0xff]
      %v236 = vld [vmem:[%s209 + $0x68] sm:$0xff]
      %v237 = vld [vmem:[%s209 + $0x70] sm:$0xff]
      %v238 = vld [vmem:[%s209 + $0x78] sm:$0xff]
      %v239 = vld [vmem:[%s209 + $0x80] sm:$0xff]
      %v240 = vld [vmem:[%s209 + $0x88] sm:$0xff]
      %v241 = vld [vmem:[%s209 + $0x90] sm:$0xff]
      %v242 = vld [vmem:[%s209 + $0x98] sm:$0xff]
      %v243 = vld [vmem:[%s209 + $0xa0] sm:$0xff]
      %v244 = vld [vmem:[%s209 + $0xa8] sm:$0xff]
      %v245 = vld [vmem:[%s209 + $0xb0] sm:$0xff]
      %v246 = vld [vmem:[%s209 + $0xb8] sm:$0xff]
      %v247 = vld [vmem:[%s209 + $0xc0] sm:$0xff]
      %v248 = vld [vmem:[%s209 + $0xc8] sm:$0xff]
      %v249 = vld [vmem:[%s209 + $0xd0] sm:$0xff]
      %v250 = vld [vmem:[%s209 + $0xd8] sm:$0xff]
      %v251 = vld [vmem:[%s209 + $0xe0] sm:$0xff]
      %v252 = vld [vmem:[%s209 + $0xe8] sm:$0xff]
      %v253 = vld [vmem:[%s209 + $0xf0] sm:$0xff]
      %v254 = vld [vmem:[%s209 + $0xf8] sm:$0xff]
      %v255 = vld [vmem:[%s2] sm:$0x1]
      %v257 = vlaneseq
      %v258 = vshrl.u32 %v257, 7
      %v259 = vsub.s32 0, %v258
      %v260 = vrot.slane %v255, %v259
      %v262 = vmul.f32 %v223, %v260
      %v263 = vmul.f32 %v224, %v260
      %v264 = vmul.f32 %v225, %v260
      %v265 = vmul.f32 %v226, %v260
      %v266 = vmul.f32 %v227, %v260
      %v267 = vmul.f32 %v228, %v260
      %v268 = vmul.f32 %v229, %v260
      %v269 = vmul.f32 %v230, %v260
      %v270 = vmul.f32 %v231, %v260
      %v271 = vmul.f32 %v232, %v260
      %v272 = vmul.f32 %v233, %v260
      %v273 = vmul.f32 %v234, %v260
      %v274 = vmul.f32 %v235, %v260
      %v275 = vmul.f32 %v236, %v260
      %v276 = vmul.f32 %v237, %v260
      %v277 = vmul.f32 %v238, %v260
      %v278 = vmul.f32 %v239, %v260
      %v279 = vmul.f32 %v240, %v260
      %v280 = vmul.f32 %v241, %v260
      %v281 = vmul.f32 %v242, %v260
      %v282 = vmul.f32 %v243, %v260
      %v283 = vmul.f32 %v244, %v260
      %v284 = vmul.f32 %v245, %v260
      %v285 = vmul.f32 %v246, %v260
      %v286 = vmul.f32 %v247, %v260
      %v287 = vmul.f32 %v248, %v260
      %v288 = vmul.f32 %v249, %v260
      %v289 = vmul.f32 %v250, %v260
      %v290 = vmul.f32 %v251, %v260
      %v291 = vmul.f32 %v252, %v260
      %v292 = vmul.f32 %v253, %v260
      %v293 = vmul.f32 %v254, %v260
      %v294 = vld [vmem:[%s3] sm:$0x1]
      %v296 = vlaneseq
      %v297 = vshrl.u32 %v296, 7
      %v298 = vsub.s32 0, %v297
      %v299 = vrot.slane %v294, %v298
      %v301 = vadd.f32 %v262, %v299
      %v302 = vadd.f32 %v263, %v299
      %v303 = vadd.f32 %v264, %v299
      %v304 = vadd.f32 %v265, %v299
      %v305 = vadd.f32 %v266, %v299
      %v306 = vadd.f32 %v267, %v299
      %v307 = vadd.f32 %v268, %v299
      %v308 = vadd.f32 %v269, %v299
      %v309 = vadd.f32 %v270, %v299
      %v310 = vadd.f32 %v271, %v299
      %v311 = vadd.f32 %v272, %v299
      %v312 = vadd.f32 %v273, %v299
      %v313 = vadd.f32 %v274, %v299
      %v314 = vadd.f32 %v275, %v299
      %v315 = vadd.f32 %v276, %v299
      %v316 = vadd.f32 %v277, %v299
      %v317 = vadd.f32 %v278, %v299
      %v318 = vadd.f32 %v279, %v299
      %v319 = vadd.f32 %v280, %v299
      %v320 = vadd.f32 %v281, %v299
      %v321 = vadd.f32 %v282, %v299
      %v322 = vadd.f32 %v283, %v299
      %v323 = vadd.f32 %v284, %v299
      %v324 = vadd.f32 %v285, %v299
      %v325 = vadd.f32 %v286, %v299
      %v326 = vadd.f32 %v287, %v299
      %v327 = vadd.f32 %v288, %v299
      %v328 = vadd.f32 %v289, %v299
      %v329 = vadd.f32 %v290, %v299
      %v330 = vadd.f32 %v291, %v299
      %v331 = vadd.f32 %v292, %v299
      %v332 = vadd.f32 %v293, %v299
      %v333 = vld [vmem:[%s215] sm:$0xff]
      %v334 = vld [vmem:[%s215 + $0x8] sm:$0xff]
      %v335 = vld [vmem:[%s215 + $0x10] sm:$0xff]
      %v336 = vld [vmem:[%s215 + $0x18] sm:$0xff]
      %v337 = vld [vmem:[%s215 + $0x20] sm:$0xff]
      %v338 = vld [vmem:[%s215 + $0x28] sm:$0xff]
      %v339 = vld [vmem:[%s215 + $0x30] sm:$0xff]
      %v340 = vld [vmem:[%s215 + $0x38] sm:$0xff]
      %v341 = vld [vmem:[%s215 + $0x40] sm:$0xff]
      %v342 = vld [vmem:[%s215 + $0x48] sm:$0xff]
      %v343 = vld [vmem:[%s215 + $0x50] sm:$0xff]
      %v344 = vld [vmem:[%s215 + $0x58] sm:$0xff]
      %v345 = vld [vmem:[%s215 + $0x60] sm:$0xff]
      %v346 = vld [vmem:[%s215 + $0x68] sm:$0xff]
      %v347 = vld [vmem:[%s215 + $0x70] sm:$0xff]
      %v348 = vld [vmem:[%s215 + $0x78] sm:$0xff]
      %v349 = vld [vmem:[%s215 + $0x80] sm:$0xff]
      %v350 = vld [vmem:[%s215 + $0x88] sm:$0xff]
      %v351 = vld [vmem:[%s215 + $0x90] sm:$0xff]
      %v352 = vld [vmem:[%s215 + $0x98] sm:$0xff]
      %v353 = vld [vmem:[%s215 + $0xa0] sm:$0xff]
      %v354 = vld [vmem:[%s215 + $0xa8] sm:$0xff]
      %v355 = vld [vmem:[%s215 + $0xb0] sm:$0xff]
      %v356 = vld [vmem:[%s215 + $0xb8] sm:$0xff]
      %v357 = vld [vmem:[%s215 + $0xc0] sm:$0xff]
      %v358 = vld [vmem:[%s215 + $0xc8] sm:$0xff]
      %v359 = vld [vmem:[%s215 + $0xd0] sm:$0xff]
      %v360 = vld [vmem:[%s215 + $0xd8] sm:$0xff]
      %v361 = vld [vmem:[%s215 + $0xe0] sm:$0xff]
      %v362 = vld [vmem:[%s215 + $0xe8] sm:$0xff]
      %v363 = vld [vmem:[%s215 + $0xf0] sm:$0xff]
      %v364 = vld [vmem:[%s215 + $0xf8] sm:$0xff]
      %v365 = vadd.f32 %v301, %v333
      %v366 = vadd.f32 %v302, %v334
      %v367 = vadd.f32 %v303, %v335
      %v368 = vadd.f32 %v304, %v336
      %v369 = vadd.f32 %v305, %v337
      %v370 = vadd.f32 %v306, %v338
      %v371 = vadd.f32 %v307, %v339
      %v372 = vadd.f32 %v308, %v340
      %v373 = vadd.f32 %v309, %v341
      %v374 = vadd.f32 %v310, %v342
      %v375 = vadd.f32 %v311, %v343
      %v376 = vadd.f32 %v312, %v344
      %v377 = vadd.f32 %v313, %v345
      %v378 = vadd.f32 %v314, %v346
      %v379 = vadd.f32 %v315, %v347
      %v380 = vadd.f32 %v316, %v348
      %v381 = vadd.f32 %v317, %v349
      %v382 = vadd.f32 %v318, %v350
      %v383 = vadd.f32 %v319, %v351
      %v384 = vadd.f32 %v320, %v352
      %v385 = vadd.f32 %v321, %v353
      %v386 = vadd.f32 %v322, %v354
      %v387 = vadd.f32 %v323, %v355
      %v388 = vadd.f32 %v324, %v356
      %v389 = vadd.f32 %v325, %v357
      %v390 = vadd.f32 %v326, %v358
      %v391 = vadd.f32 %v327, %v359
      %v392 = vadd.f32 %v328, %v360
      %v393 = vadd.f32 %v329, %v361
      %v394 = vadd.f32 %v330, %v362
      %v395 = vadd.f32 %v331, %v363
      %v396 = vadd.f32 %v332, %v364
      %v397 = vmax.f32 %v365, 0.0
      %v398 = vmax.f32 %v366, 0.0
      %v399 = vmax.f32 %v367, 0.0
      %v400 = vmax.f32 %v368, 0.0
      %v401 = vmax.f32 %v369, 0.0
      %v402 = vmax.f32 %v370, 0.0
      %v403 = vmax.f32 %v371, 0.0
      %v404 = vmax.f32 %v372, 0.0
      %v405 = vmax.f32 %v373, 0.0
      %v406 = vmax.f32 %v374, 0.0
      %v407 = vmax.f32 %v375, 0.0
      %v408 = vmax.f32 %v376, 0.0
      %v409 = vmax.f32 %v377, 0.0
      %v410 = vmax.f32 %v378, 0.0
      %v411 = vmax.f32 %v379, 0.0
      %v412 = vmax.f32 %v380, 0.0
      %v413 = vmax.f32 %v381, 0.0
      %v414 = vmax.f32 %v382, 0.0
      %v415 = vmax.f32 %v383, 0.0
      %v416 = vmax.f32 %v384, 0.0
      %v417 = vmax.f32 %v385, 0.0
      %v418 = vmax.f32 %v386, 0.0
      %v419 = vmax.f32 %v387, 0.0
      %v420 = vmax.f32 %v388, 0.0
      %v421 = vmax.f32 %v389, 0.0
      %v422 = vmax.f32 %v390, 0.0
      %v423 = vmax.f32 %v391, 0.0
      %v424 = vmax.f32 %v392, 0.0
      %v425 = vmax.f32 %v393, 0.0
      %v426 = vmax.f32 %v394, 0.0
      %v427 = vmax.f32 %v395, 0.0
      %v428 = vmax.f32 %v396, 0.0
      %429 = vst [vmem:[%s221] sm:$0xff] %v397
      %430 = vst [vmem:[%s221 + $0x8] sm:$0xff] %v398
      %431 = vst [vmem:[%s221 + $0x10] sm:$0xff] %v399
      %432 = vst [vmem:[%s221 + $0x18] sm:$0xff] %v400
      %433 = vst [vmem:[%s221 + $0x20] sm:$0xff] %v401
      %434 = vst [vmem:[%s221 + $0x28] sm:$0xff] %v402
      %435 = vst [vmem:[%s221 + $0x30] sm:$0xff] %v403
      %436 = vst [vmem:[%s221 + $0x38] sm:$0xff] %v404
      %437 = vst [vmem:[%s221 + $0x40] sm:$0xff] %v405
      %438 = vst [vmem:[%s221 + $0x48] sm:$0xff] %v406
      %439 = vst [vmem:[%s221 + $0x50] sm:$0xff] %v407
      %440 = vst [vmem:[%s221 + $0x58] sm:$0xff] %v408
      %441 = vst [vmem:[%s221 + $0x60] sm:$0xff] %v409
      %442 = vst [vmem:[%s221 + $0x68] sm:$0xff] %v410
      %443 = vst [vmem:[%s221 + $0x70] sm:$0xff] %v411
      %444 = vst [vmem:[%s221 + $0x78] sm:$0xff] %v412
      %445 = vst [vmem:[%s221 + $0x80] sm:$0xff] %v413
      %446 = vst [vmem:[%s221 + $0x88] sm:$0xff] %v414
      %447 = vst [vmem:[%s221 + $0x90] sm:$0xff] %v415
      %448 = vst [vmem:[%s221 + $0x98] sm:$0xff] %v416
      %449 = vst [vmem:[%s221 + $0xa0] sm:$0xff] %v417
      %450 = vst [vmem:[%s221 + $0xa8] sm:$0xff] %v418
      %451 = vst [vmem:[%s221 + $0xb0] sm:$0xff] %v419
      %452 = vst [vmem:[%s221 + $0xb8] sm:$0xff] %v420
      %453 = vst [vmem:[%s221 + $0xc0] sm:$0xff] %v421
      %454 = vst [vmem:[%s221 + $0xc8] sm:$0xff] %v422
      %455 = vst [vmem:[%s221 + $0xd0] sm:$0xff] %v423
      %456 = vst [vmem:[%s221 + $0xd8] sm:$0xff] %v424
      %457 = vst [vmem:[%s221 + $0xe0] sm:$0xff] %v425
      %458 = vst [vmem:[%s221 + $0xe8] sm:$0xff] %v426
      %459 = vst [vmem:[%s221 + $0xf0] sm:$0xff] %v427
      %460 = vst [vmem:[%s221 + $0xf8] sm:$0xff] %v428
      %s461 = smul.u32 32, %s15
      %p462 = scmp.lt.s32.totalorder %s461, 127
      %s463 = scalar_select %p462, %s461, 127
      %s464 = smul.addr %s463, 8
      %s465 = scalar_lea.vmem %s4, %s464
      // Predicated region
      $region37: #{residual_block.7} parent=35 // pred_check
        %p466 = pneg %p127
      $region38: #{residual_block.7} parent=35 // pred_check_branch
        %468 = sbr.rel (%p466) target = $region40
      $region39: #{residual_block.7} parent=35 // pred_region
        %s469 = smul.u32 32, %s15
      $region40: #{residual_block.7} parent=35 // pred_fallthru
        _
    $region36: #{residual_block.7} parent=5 // pred_fallthru
      _
    %p470 = scmp.le.s32.totalorder 2, %s10
    // Predicated region
    $region41: #{residual_block.7} parent=5 // pred_check
      %p471 = pneg %p470
    $region42: #{residual_block.7} parent=5 // pred_check_branch
      %473 = sbr.rel (%p471) target = $region44
    $region43: #{residual_block.7} parent=5 // pred_region
      %s474 = ssub.s32 %s10, 2
      // Predicated region
      $region45: #{residual_block.7} parent=43 // pred_check
        %p475 = pneg %p133
      $region46: #{residual_block.7} parent=43 // pred_check_branch
        %477 = sbr.rel (%p475) target = $region48
      $region47: #{residual_block.7} parent=43 // pred_region
        %s478 = smul.u32 32, %s16
        %p479 = scmp.lt.s32.totalorder %s478, 127
        %s480 = scalar_select %p479, %s478, 127
        %s481 = smul.addr %s480, 8
        %s482 = scalar_lea.vmem %s4, %s481
      $region48: #{residual_block.7} parent=43 // pred_fallthru
        _
    $region44: #{residual_block.7} parent=5 // pred_fallthru
      _
  $region6: #{residual_block.7} parent=0 // loop_footer
    %s14 = sadd.s32 1, %s10
  $region7: #{residual_block.7} parent=0 // loop_footer_branch
    %9 = sbr.rel target = $region3
  $region8: #{residual_block.7} parent=0 // loop_exit
    _

</llo_original>
